<compile_context>
chip_gen: v7x
topology: tpu7x:2x2x1
jax: 0.10.0
libtpu: 0.0.40
codegen_flags: <defaults>
</compile_context>

<pallas_src>
import functools

import jax
import jax.numpy as jnp
from jax.experimental import pallas as pl
from jax.experimental.pallas import tpu as pltpu


def _round_up(x, m):
    return (x + m - 1) // m * m


def _pick_th(h, wp8, max_rows=1024):
    """Largest divisor of h whose tile (th * wp8 rows) stays under max_rows."""
    cap = max(1, max_rows // wp8)
    best = 1
    for d in range(1, h + 1):
        if h % d == 0 and d <= cap:
            best = d
    return best


def _conv3bn_kernel(x_ref, w_ref, scale_ref, shift_ref, o_ref, fused_ref, acc_ref):
    # x_ref:     (1, 1, r3, Cin_p)     flattened padded H-tile (+8 zero tail rows)
    # w_ref:     (3, 3*Cin_p, Cout_p)  one slab per stencil row kh (kw fused in rows)
    # scale_ref: (1, Cout_p)           folded BN scale (1.0 where bn disabled / padded)
    # shift_ref: (1, Cout_p)           conv bias (+ folded BN shift)
    # o_ref:     (1, 1, rows, Cout_p)  flattened output tile, rows = th*wp8
    # fused_ref: (r2, 3*Cin_p)         kw-fused im2col patch (VMEM scratch)
    # acc_ref:   (rows, Cout_p) f32    accumulator (VMEM scratch)
    r2, cfused = fused_ref.shape
    cin_p = cfused // 3
    rows, cout_p = acc_ref.shape
    wp8 = (r2 - rows) // 2            # r2 = (th+2)*wp8, rows = th*wp8

    # Build the kw-fused patch once: fused[q, kw*Cin_p:(kw+1)*Cin_p] = x_flat[q+kw].
    # Three shifted row reads; all stores are lane/sublane aligned (Cin_p=128k,
    # r2 % 8 == 0).  This replaces the 9 materialized shifted slice+reshape copies.
    for kw in range(3):
        fused_ref[:, kw * cin_p:(kw + 1) * cin_p] = x_ref[0, 0, pl.ds(kw, r2), :]

    # 3 MXU matmuls, one per stencil row kh; contraction depth = 3*Cin_p.
    # Row offsets kh*wp8 are multiples of 8 -> aligned operand loads, no copy.
    acc_ref[...] = jnp.dot(fused_ref[pl.ds(0, rows), :], w_ref[0],
                           preferred_element_type=jnp.float32)
    acc_ref[...] += jnp.dot(fused_ref[pl.ds(wp8, rows), :], w_ref[1],
                            preferred_element_type=jnp.float32)
    acc_ref[...] += jnp.dot(fused_ref[pl.ds(2 * wp8, rows), :], w_ref[2],
                            preferred_element_type=jnp.float32)

    # Fused scale/shift (conv bias + folded eval-mode BN) + ReLU, f32 epilogue.
    y = acc_ref[...] * scale_ref[0] + shift_ref[0]
    y = jnp.maximum(y, 0.0)
    o_ref[...] = y.reshape(1, 1, rows, cout_p).astype(o_ref.dtype)


def conv3bn_nhwc(x_nhwc, weight, bias, bn_params=None, *, bn=False, th=None,
                 compute_dtype=jnp.float32):
    """One Conv3BN layer in NHWC.

    x_nhwc : (N, H, W, Cx) with Cx >= Cin; extra channels are ignored (their
             weights are zero-padded), so channel-padded activations chain freely.
    weight : (Cout, Cin, 3, 3) PyTorch layout.  bias: (Cout,).
    Returns (N, H, W, Cout_p) f32 with channels >= Cout exactly zero.
    """
    n, h, w, cx = x_nhwc.shape
    cout, cin, kh, kw = weight.shape
    assert (kh, kw) == (3, 3)

    cin_p = _round_up(max(cx, cin), 128)
    cout_p = _round_up(cout, 128)
    wp8 = _round_up(w + 2, 8)              # padded width, sublane aligned
    if th is None:
        th = _pick_th(h, wp8)
    assert h % th == 0
    n_t = h // th
    thp = th + 2                           # tile rows incl. 2-row halo
    r2 = thp * wp8                         # flattened tile rows
    r3 = r2 + 8                            # + zero tail so shifted reads stay in-bounds
    rows = th * wp8                        # flattened output rows per tile

    # Weights: (Cout, Cin, 3, 3) -> (3, 3*Cin_p, Cout_p), kh-major; row = kw*Cin_p + ci.
    wt = jnp.transpose(weight, (2, 3, 1, 0))                       # (3, 3, Cin, Cout)
    wt = jnp.pad(wt, ((0, 0), (0, 0), (0, cin_p - cin), (0, cout_p - cout)))
    w_taps = wt.reshape(3, 3 * cin_p, cout_p).astype(compute_dtype)

    # Fold conv bias and eval-mode BatchNorm into one scale/shift.
    if bn and bn_params is not None:
        gamma = bn_params["gamma"]
        beta = bn_params["beta"]
        mean = bn_params["running_mean"]
        var = bn_params["running_var"]
        eps = bn_params["eps"]
        scale = gamma / jnp.sqrt(var + eps)
        shift = (bias - mean) * scale + beta
    else:
        # TODO(synk): training-mode BatchNorm (batch statistics + running-stat
        # updates) not implemented; eval-mode folded BN / bn=False only.
        scale = jnp.ones((cout,), jnp.float32)
        shift = bias.astype(jnp.float32)
    scale = jnp.pad(scale.astype(jnp.float32), (0, cout_p - cout),
                    constant_values=1.0).reshape(1, cout_p)
    shift = jnp.pad(shift.astype(jnp.float32), (0, cout_p - cout)).reshape(1, cout_p)

    # Input: channel pad, spatial pad (1 top/bottom/left, right up to wp8),
    # overlapping H-tiles (2-row halo), flatten (thp, wp8) -> r2 rows, + 8 zero rows.
    x = x_nhwc.astype(compute_dtype)
    x_pad = jnp.pad(x, ((0, 0), (1, 1), (1, wp8 - (w + 1)), (0, cin_p - cx)))
    row_idx = jnp.arange(n_t)[:, None] * th + jnp.arange(thp)[None, :]   # (n_t, thp)
    x_tiles = x_pad[:, row_idx]                                          # (N, n_t, thp, wp8, Cin_p)
    x_tiles = x_tiles.reshape(n, n_t, r2, cin_p)
    x_tiles = jnp.pad(x_tiles, ((0, 0), (0, 0), (0, r3 - r2), (0, 0)))

    # VMEM budget (per grid step): double-buffered input + output blocks,
    # fused/acc scratch, (up to 2x-buffered) weights.  Sized so it fits v7x.
    itm = jnp.dtype(compute_dtype).itemsize
    est = (2 * r3 * cin_p * itm
           + 2 * rows * cout_p * 4
           + r2 * 3 * cin_p * itm
           + rows * cout_p * 4
           + 2 * 3 * 3 * cin_p * cout_p * itm
           + 4 * cout_p * 4)
    vmem_limit = int(min(max(2 * est, 32 * 1024 * 1024), 48 * 1024 * 1024))

    cost = pl.CostEstimate(
        flops=2 * n * h * w * 9 * cin_p * cout_p,
        transcendentals=0,
        bytes_accessed=(x_tiles.size * itm
                        + n * n_t * rows * cout_p * 4
                        + w_taps.size * itm))

    out_flat = pl.pallas_call(
        _conv3bn_kernel,
        out_shape=jax.ShapeDtypeStruct((n, n_t, rows, cout_p), jnp.float32),
        grid_spec=pltpu.PrefetchScalarGridSpec(
            num_scalar_prefetch=0,
            grid=(n, n_t),
            in_specs=[
                pl.BlockSpec((1, 1, r3, cin_p), lambda b, t: (b, t, 0, 0)),
                pl.BlockSpec((3, 3 * cin_p, cout_p), lambda b, t: (0, 0, 0)),
                pl.BlockSpec((1, cout_p), lambda b, t: (0, 0)),
                pl.BlockSpec((1, cout_p), lambda b, t: (0, 0)),
            ],
            out_specs=pl.BlockSpec((1, 1, rows, cout_p), lambda b, t: (b, t, 0, 0)),
            scratch_shapes=[
                pltpu.VMEM((r2, 3 * cin_p), compute_dtype),   # kw-fused patch
                pltpu.VMEM((rows, cout_p), jnp.float32),      # f32 accumulator
            ],
        ),
        compiler_params=pltpu.CompilerParams(
            dimension_semantics=("parallel", "parallel"),
            vmem_limit_bytes=vmem_limit),
        cost_estimate=cost,
    )(x_tiles, w_taps, scale, shift)

    # (N, n_t, rows, Cout_p) -> (N, H, W, Cout_p): drop padded columns, merge tiles.
    out = out_flat.reshape(n, n_t, th, wp8, cout_p)[:, :, :, :w, :]
    return out.reshape(n, h, w, cout_p)


@functools.partial(jax.jit, static_argnames=("bn", "th", "compute_dtype"))
def unet_module_forward(x_nchw, params, *, bn=False, th=None,
                        compute_dtype=jnp.float32):
    """UNetModule forward: Conv3BN(in_, out) -> Conv3BN(out, out), NCHW in/out."""
    cout2 = params["w2"].shape[0]
    x = jnp.transpose(x_nchw, (0, 2, 3, 1))          # NCHW -> NHWC, once
    y = conv3bn_nhwc(x, params["w1"], params["b1"], params.get("bn1"),
                     bn=bn, th=th, compute_dtype=compute_dtype)
    y = conv3bn_nhwc(y, params["w2"], params["b2"], params.get("bn2"),
                     bn=bn, th=th, compute_dtype=compute_dtype)
    y = y[..., :cout2]                               # drop channel padding
    return jnp.transpose(y, (0, 3, 1, 2)).astype(x_nchw.dtype)   # NHWC -> NCHW, once


def _reference(x, w1, b1, w2, b2):
    def conv(z, wgt, b):
        y = jax.lax.conv_general_dilated(
            z, wgt, window_strides=(1, 1), padding="SAME",
            dimension_numbers=("NCHW", "OIHW", "NCHW"),
            precision=jax.lax.Precision.HIGHEST)
        return jnp.maximum(y + b[None, :, None, None], 0.0)
    return conv(conv(x, w1, b1), w2, b2)


if __name__ == "__main__":
    key = jax.random.PRNGKey(0)
    k1, k2, k3, k4, k5 = jax.random.split(key, 5)

    N, Cin, Cout, H, W = 2, 4, 8, 16, 16
    x = jax.random.normal(k1, (N, Cin, H, W), dtype=jnp.float32)
    w1 = 0.1 * jax.random.normal(k2, (Cout, Cin, 3, 3), dtype=jnp.float32)
    b1 = 0.1 * jax.random.normal(k3, (Cout,), dtype=jnp.float32)
    w2 = 0.1 * jax.random.normal(k4, (Cout, Cout, 3, 3), dtype=jnp.float32)
    b2 = 0.1 * jax.random.normal(k5, (Cout,), dtype=jnp.float32)
    params = {"w1": w1, "b1": b1, "w2": w2, "b2": b2}

    # th=8 forces 2 H-tiles per image -> grid (N=2, n_t=2), exercising the halo tiling.
    out = unet_module_forward(x, params, bn=False, th=8)
    out = jax.block_until_ready(out)

    ref = _reference(x, w1, b1, w2, b2)
    assert out.shape == (N, Cout, H, W)
    err = float(jnp.max(jnp.abs(out - ref)))
    assert err < 1e-3, f"max abs err {err}"

    print("KERNEL_OK")
</pallas_src>

<mosaic_0001>
module attributes {stable_mosaic.version = 11 : i64} {
  func.func @_conv3bn_kernel(%arg0: i32, %arg1: i32, %arg2: memref<1x1x248x128xf32, #tpu.memory_space<vmem>>, %arg3: memref<3x384x128xf32, #tpu.memory_space<vmem>>, %arg4: memref<1x128xf32, #tpu.memory_space<vmem>>, %arg5: memref<1x128xf32, #tpu.memory_space<vmem>>, %arg6: memref<1x1x192x128xf32, #tpu.memory_space<vmem>>, %arg7: memref<240x384xf32, #tpu.memory_space<vmem>>, %arg8: memref<192x128xf32, #tpu.memory_space<vmem>>) attributes {dimension_semantics = [#tpu.dimension_semantics<parallel>, #tpu.dimension_semantics<parallel>], iteration_bounds = array<i64: 2, 2>, scalar_prefetch = 0 : i64, scratch_operands = 2 : i64, tpu.core_type = #tpu.core_type<tc>, window_params = [{transform_indices = @transform_0, window_bounds = array<i64: 1, 1, 248, 128>}, {pipeline_mode = #tpu.pipeline_mode<synchronous>, transform_indices = @transform_1, window_bounds = array<i64: 3, 384, 128>}, {pipeline_mode = #tpu.pipeline_mode<synchronous>, transform_indices = @transform_2, window_bounds = array<i64: 1, 128>}, {pipeline_mode = #tpu.pipeline_mode<synchronous>, transform_indices = @transform_3, window_bounds = array<i64: 1, 128>}, {transform_indices = @transform_4, window_bounds = array<i64: 1, 1, 192, 128>}]} {
    %c0 = arith.constant 0 : index
    %c0_0 = arith.constant 0 : index
    %c0_1 = arith.constant 0 : index
    %c0_2 = arith.constant 0 : index
    %0 = vector.load %arg2[%c0, %c0_0, %c0_1, %c0_2] : memref<1x1x248x128xf32, #tpu.memory_space<vmem>>, vector<1x1x240x128xf32>
    %1 = vector.shape_cast %0 : vector<1x1x240x128xf32> to vector<240x128xf32>
    %c0_3 = arith.constant 0 : index
    %c0_4 = arith.constant 0 : index
    %2 = vector.load %arg7[%c0_3, %c0_4] : memref<240x384xf32, #tpu.memory_space<vmem>>, vector<240x128xf32>
    tpu.vector_store %arg7[%c0_3, %c0_4], %1 {strides = array<i32>} : memref<240x384xf32, #tpu.memory_space<vmem>>, vector<240x128xf32>,
    %c0_5 = arith.constant 0 : index
    %c0_6 = arith.constant 0 : index
    %c1 = arith.constant 1 : index
    %c0_7 = arith.constant 0 : index
    %3 = vector.load %arg2[%c0_5, %c0_6, %c1, %c0_7] : memref<1x1x248x128xf32, #tpu.memory_space<vmem>>, vector<1x1x240x128xf32>
    %4 = vector.shape_cast %3 : vector<1x1x240x128xf32> to vector<240x128xf32>
    %c0_8 = arith.constant 0 : index
    %c128 = arith.constant 128 : index
    %5 = vector.load %arg7[%c0_8, %c128] : memref<240x384xf32, #tpu.memory_space<vmem>>, vector<240x128xf32>
    tpu.vector_store %arg7[%c0_8, %c128], %4 {strides = array<i32>} : memref<240x384xf32, #tpu.memory_space<vmem>>, vector<240x128xf32>,
    %c0_9 = arith.constant 0 : index
    %c0_10 = arith.constant 0 : index
    %c2 = arith.constant 2 : index
    %c0_11 = arith.constant 0 : index
    %6 = vector.load %arg2[%c0_9, %c0_10, %c2, %c0_11] : memref<1x1x248x128xf32, #tpu.memory_space<vmem>>, vector<1x1x240x128xf32>
    %7 = vector.shape_cast %6 : vector<1x1x240x128xf32> to vector<240x128xf32>
    %c0_12 = arith.constant 0 : index
    %c256 = arith.constant 256 : index
    %8 = vector.load %arg7[%c0_12, %c256] : memref<240x384xf32, #tpu.memory_space<vmem>>, vector<240x128xf32>
    tpu.vector_store %arg7[%c0_12, %c256], %7 {strides = array<i32>} : memref<240x384xf32, #tpu.memory_space<vmem>>, vector<240x128xf32>,
    %c0_13 = arith.constant 0 : index
    %c0_14 = arith.constant 0 : index
    %9 = vector.load %arg7[%c0_13, %c0_14] : memref<240x384xf32, #tpu.memory_space<vmem>>, vector<192x384xf32>
    %c0_15 = arith.constant 0 : index
    %c0_16 = arith.constant 0 : index
    %c0_17 = arith.constant 0 : index
    %10 = vector.load %arg3[%c0_15, %c0_16, %c0_17] : memref<3x384x128xf32, #tpu.memory_space<vmem>>, vector<1x384x128xf32>
    %11 = vector.shape_cast %10 : vector<1x384x128xf32> to vector<384x128xf32>
    %cst = arith.constant dense<0.000000e+00> : vector<192x128xf32>
    %12 = tpu.matmul %9, %11, %cst {dimension_numbers = #tpu.dot_dimension_numbers<[1], [0], [0], [1], [0, 0, 1, 1], [], []>} : vector<192x384xf32>, vector<384x128xf32>, vector<192x128xf32> -> vector<192x128xf32>
    %c0_18 = arith.constant 0 : index
    %c0_19 = arith.constant 0 : index
    %13 = vector.load %arg8[%c0_18, %c0_19] : memref<192x128xf32, #tpu.memory_space<vmem>>, vector<192x128xf32>
    tpu.vector_store %arg8[%c0_18, %c0_19], %12 {strides = array<i32>} : memref<192x128xf32, #tpu.memory_space<vmem>>, vector<192x128xf32>,
    %c0_20 = arith.constant 0 : index
    %c0_21 = arith.constant 0 : index
    %14 = vector.load %arg8[%c0_20, %c0_21] : memref<192x128xf32, #tpu.memory_space<vmem>>, vector<192x128xf32>
    %c24 = arith.constant 24 : index
    %c0_22 = arith.constant 0 : index
    %15 = vector.load %arg7[%c24, %c0_22] : memref<240x384xf32, #tpu.memory_space<vmem>>, vector<192x384xf32>
    %c1_23 = arith.constant 1 : index
    %c0_24 = arith.constant 0 : index
    %c0_25 = arith.constant 0 : index
    %16 = vector.load %arg3[%c1_23, %c0_24, %c0_25] : memref<3x384x128xf32, #tpu.memory_space<vmem>>, vector<1x384x128xf32>
    %17 = vector.shape_cast %16 : vector<1x384x128xf32> to vector<384x128xf32>
    %cst_26 = arith.constant dense<0.000000e+00> : vector<192x128xf32>
    %18 = tpu.matmul %15, %17, %cst_26 {dimension_numbers = #tpu.dot_dimension_numbers<[1], [0], [0], [1], [0, 0, 1, 1], [], []>} : vector<192x384xf32>, vector<384x128xf32>, vector<192x128xf32> -> vector<192x128xf32>
    %19 = arith.addf %14, %18 : vector<192x128xf32>
    %c0_27 = arith.constant 0 : index
    %c0_28 = arith.constant 0 : index
    %20 = vector.load %arg8[%c0_27, %c0_28] : memref<192x128xf32, #tpu.memory_space<vmem>>, vector<192x128xf32>
    tpu.vector_store %arg8[%c0_27, %c0_28], %19 {strides = array<i32>} : memref<192x128xf32, #tpu.memory_space<vmem>>, vector<192x128xf32>,
    %c0_29 = arith.constant 0 : index
    %c0_30 = arith.constant 0 : index
    %21 = vector.load %arg8[%c0_29, %c0_30] : memref<192x128xf32, #tpu.memory_space<vmem>>, vector<192x128xf32>
    %c48 = arith.constant 48 : index
    %c0_31 = arith.constant 0 : index
    %22 = vector.load %arg7[%c48, %c0_31] : memref<240x384xf32, #tpu.memory_space<vmem>>, vector<192x384xf32>
    %c2_32 = arith.constant 2 : index
    %c0_33 = arith.constant 0 : index
    %c0_34 = arith.constant 0 : index
    %23 = vector.load %arg3[%c2_32, %c0_33, %c0_34] : memref<3x384x128xf32, #tpu.memory_space<vmem>>, vector<1x384x128xf32>
    %24 = vector.shape_cast %23 : vector<1x384x128xf32> to vector<384x128xf32>
    %cst_35 = arith.constant dense<0.000000e+00> : vector<192x128xf32>
    %25 = tpu.matmul %22, %24, %cst_35 {dimension_numbers = #tpu.dot_dimension_numbers<[1], [0], [0], [1], [0, 0, 1, 1], [], []>} : vector<192x384xf32>, vector<384x128xf32>, vector<192x128xf32> -> vector<192x128xf32>
    %26 = arith.addf %21, %25 : vector<192x128xf32>
    %c0_36 = arith.constant 0 : index
    %c0_37 = arith.constant 0 : index
    %27 = vector.load %arg8[%c0_36, %c0_37] : memref<192x128xf32, #tpu.memory_space<vmem>>, vector<192x128xf32>
    tpu.vector_store %arg8[%c0_36, %c0_37], %26 {strides = array<i32>} : memref<192x128xf32, #tpu.memory_space<vmem>>, vector<192x128xf32>,
    %c0_38 = arith.constant 0 : index
    %c0_39 = arith.constant 0 : index
    %28 = vector.load %arg8[%c0_38, %c0_39] : memref<192x128xf32, #tpu.memory_space<vmem>>, vector<192x128xf32>
    %c0_40 = arith.constant 0 : index
    %c0_41 = arith.constant 0 : index
    %29 = vector.load %arg4[%c0_40, %c0_41] : memref<1x128xf32, #tpu.memory_space<vmem>>, vector<1x128xf32>
    %30 = vector.shape_cast %29 : vector<1x128xf32> to vector<128xf32>
    %31 = vector.shape_cast %30 : vector<128xf32> to vector<1x128xf32>
    %32 = vector.broadcast %31 : vector<1x128xf32> to vector<192x128xf32>
    %33 = arith.mulf %28, %32 : vector<192x128xf32>
    %c0_42 = arith.constant 0 : index
    %c0_43 = arith.constant 0 : index
    %34 = vector.load %arg5[%c0_42, %c0_43] : memref<1x128xf32, #tpu.memory_space<vmem>>, vector<1x128xf32>
    %35 = vector.shape_cast %34 : vector<1x128xf32> to vector<128xf32>
    %36 = vector.shape_cast %35 : vector<128xf32> to vector<1x128xf32>
    %37 = vector.broadcast %36 : vector<1x128xf32> to vector<192x128xf32>
    %38 = arith.addf %33, %37 : vector<192x128xf32>
    %cst_44 = arith.constant 0.000000e+00 : f32
    %39 = vector.broadcast %cst_44 : f32 to vector<192x128xf32>
    %40 = arith.maximumf %38, %39 : vector<192x128xf32>
    %41 = vector.shape_cast %40 : vector<192x128xf32> to vector<1x1x192x128xf32>
    %c0_45 = arith.constant 0 : index
    %c0_46 = arith.constant 0 : index
    %c0_47 = arith.constant 0 : index
    %c0_48 = arith.constant 0 : index
    %42 = vector.load %arg6[%c0_45, %c0_46, %c0_47, %c0_48] : memref<1x1x192x128xf32, #tpu.memory_space<vmem>>, vector<1x1x192x128xf32>
    tpu.vector_store %arg6[%c0_45, %c0_46, %c0_47, %c0_48], %41 {strides = array<i32>} : memref<1x1x192x128xf32, #tpu.memory_space<vmem>>, vector<1x1x192x128xf32>,
    return
  }
  func.func @transform_0(%arg0: i32, %arg1: i32) -> (i32, i32, i32, i32) {
    %c0_i32 = arith.constant 0 : i32
    %c0_i32_0 = arith.constant 0 : i32
    %c0_i32_1 = arith.constant 0 : i32
    return %arg0, %arg1, %c0_i32, %c0_i32_0 : i32, i32, i32, i32
  }
  func.func @transform_1(%arg0: i32, %arg1: i32) -> (i32, i32, i32) {
    %c0_i32 = arith.constant 0 : i32
    %c0_i32_0 = arith.constant 0 : i32
    %c0_i32_1 = arith.constant 0 : i32
    %c0_i32_2 = arith.constant 0 : i32
    return %c0_i32, %c0_i32_0, %c0_i32_1 : i32, i32, i32
  }
  func.func @transform_2(%arg0: i32, %arg1: i32) -> (i32, i32) {
    %c0_i32 = arith.constant 0 : i32
    %c0_i32_0 = arith.constant 0 : i32
    %c0_i32_1 = arith.constant 0 : i32
    return %c0_i32, %c0_i32_0 : i32, i32
  }
  func.func @transform_3(%arg0: i32, %arg1: i32) -> (i32, i32) {
    %c0_i32 = arith.constant 0 : i32
    %c0_i32_0 = arith.constant 0 : i32
    %c0_i32_1 = arith.constant 0 : i32
    return %c0_i32, %c0_i32_0 : i32, i32
  }
  func.func @transform_4(%arg0: i32, %arg1: i32) -> (i32, i32, i32, i32) {
    %c0_i32 = arith.constant 0 : i32
    %c0_i32_0 = arith.constant 0 : i32
    %c0_i32_1 = arith.constant 0 : i32
    return %arg0, %arg1, %c0_i32, %c0_i32_0 : i32, i32, i32, i32
  }
}

</mosaic_0001>

<llo_original>
// kernel: unet_module_forward.2
$region0: #{unet_module_forward.2}
  #allocation0 [shape = 'u32[]', space=smem, size = 0x4, offset = 0x4, fixed_abs, tag = 'smem constant byte address 0x4 - core index']
  #allocation1 [shape = 'u32[144,128]{1,0:T(1,128)}', space=vmem, size = 0x12000, scoped, tag = 'internal scratch']
  #allocation2 [shape = 'f32[240,384]{1,0:T(8,128)}', space=vmem, size = 0x5a000, scoped, tag = 'scratch operand']
  #allocation3 [shape = 'f32[192,128]{1,0:T(8,128)}', space=vmem, size = 0x18000, scoped, tag = 'scratch operand']
  %s0 = inlined_call_operand.vmem [shape: f32[2,2,248,128], index: 0, kind: input, shape index: {}]
  %s1 = inlined_call_operand.vmem [shape: f32[3,384,128], index: 1, kind: input, shape index: {}]
  %s2 = inlined_call_operand.vmem [shape: f32[1,128], index: 2, kind: input, shape index: {}]
  %s3 = inlined_call_operand.vmem [shape: f32[1,128], index: 3, kind: input, shape index: {}]
  %s4 = inlined_call_operand.vmem [shape: f32[2,2,192,128], index: 4, kind: output, shape index: {}]
  %s5 = sld [smem:[#allocation0]]
  $region49: #{unet_module_forward.2} parent=0
    _
  %s7 = ssub.s32 1, %s5
  %s8 = scalar_select 0, %s7, %s5
  loop: start=0, step=1, limit=6
  $region2: #{unet_module_forward.2} parent=0 // loop_pre_header
    _
  $region3: #{unet_module_forward.2} parent=0 // loop_header
    %s10 = sphi 0, %s14
    %p11 = scmp.ge.s32.totalorder %s10, 6
    %s17 = sphi 0, %s29
    %s18 = sphi 0, %s25
    %s19 = sphi 0, %s17
    %s20 = sphi 0, %s18
    %s21 = sphi 0, %s19
    %s22 = sphi 0, %s20
    %s34 = sphi 0, %s36
    %s37 = sphi 0, %s34
    %s38 = sphi 0, %s37
    %s54 = sphi 0, %s38
    %s58 = sphi 0, %s58
    %s60 = sphi 0, %s58
    %s61 = sphi 0, %s60
    %s75 = sphi 0, %s61
    %s79 = sphi 0, %s79
    %s81 = sphi 0, %s79
    %s82 = sphi 0, %s81
    %s96 = sphi 0, %s82
    %s100 = sphi 0, %s100
    %s102 = sphi 0, %s100
    %s103 = sphi 0, %s102
    %s117 = sphi 0, %s103
    %s125 = sphi 0, %s127
    %s128 = sphi 0, %s125
    %s129 = sphi 0, %s128
    %s145 = sphi 0, %s129
  $region4: #{unet_module_forward.2} parent=0 // loop_header_branch
    %13 = sbr.rel (%p11) target = $region8
  $region5: #{unet_module_forward.2} parent=0 // loop_body
    %s15 = ssub.s32 %s10, 1
    %s16 = ssub.s32 %s10, 2
    %s23 = sadd.s32 1, %s18
    %p24 = scmp.ge.s32.totalorder %s23, 2
    %s25 = scalar_select %p24, 0, %s23
    %s26 = sadd.s32 1, %s17
    %s27 = scalar_select %p24, %s26, %s17
    %p28 = scmp.ge.s32.totalorder %s27, 2
    %s29 = scalar_select %p28, 0, %s27
    %s30 = ssub.s32 %s17, %s29
    %s31 = ssub.s32 %s18, %s25
    %s32 = sor.u32 %s30, %s31
    %p33 = scmp.eq.s32.totalorder %s32, 0
    %s35 = sadd.s32 %s34, 1
    %s36 = scalar_select %p33, %s34, %s35
    %p39 = pneg %p33
    %p40 = scmp.eq.s32.totalorder %s10, 3
    %p41 = por %p39, %p40
    %p42 = scmp.ne.s32.totalorder %s34, %s37
    %p43 = scmp.eq.s32.totalorder %s10, 0
    %p44 = por %p42, %p43
    %p45 = scmp.ne.s32.totalorder %s34, %s37
    %p46 = scmp.eq.s32.totalorder %s15, 3
    %p47 = por %p45, %p46
    %p48 = scmp.ne.s32.totalorder %s37, %s38
    %p49 = scmp.eq.s32.totalorder %s15, 0
    %p50 = por %p48, %p49
    %p51 = scmp.ne.s32.totalorder %s37, %s38
    %p52 = scmp.eq.s32.totalorder %s16, 3
    %p53 = por %p51, %p52
    %p55 = scmp.ne.s32.totalorder %s38, %s54
    %p56 = scmp.eq.s32.totalorder %s16, 0
    %p57 = por %p55, %p56
    %s59 = sadd.s32 %s58, 1
    %p62 = scmp.eq.s32.totalorder %s10, 3
    %p63 = scmp.ne.s32.totalorder %s58, %s60
    %p64 = scmp.eq.s32.totalorder %s10, 0
    %p65 = por %p63, %p64
    %p66 = scmp.ne.s32.totalorder %s58, %s60
    %p67 = scmp.eq.s32.totalorder %s15, 3
    %p68 = por %p66, %p67
    %p69 = scmp.ne.s32.totalorder %s60, %s61
    %p70 = scmp.eq.s32.totalorder %s15, 0
    %p71 = por %p69, %p70
    %p72 = scmp.ne.s32.totalorder %s60, %s61
    %p73 = scmp.eq.s32.totalorder %s16, 3
    %p74 = por %p72, %p73
    %p76 = scmp.ne.s32.totalorder %s61, %s75
    %p77 = scmp.eq.s32.totalorder %s16, 0
    %p78 = por %p76, %p77
    %s80 = sadd.s32 %s79, 1
    %p83 = scmp.eq.s32.totalorder %s10, 3
    %p84 = scmp.ne.s32.totalorder %s79, %s81
    %p85 = scmp.eq.s32.totalorder %s10, 0
    %p86 = por %p84, %p85
    %p87 = scmp.ne.s32.totalorder %s79, %s81
    %p88 = scmp.eq.s32.totalorder %s15, 3
    %p89 = por %p87, %p88
    %p90 = scmp.ne.s32.totalorder %s81, %s82
    %p91 = scmp.eq.s32.totalorder %s15, 0
    %p92 = por %p90, %p91
    %p93 = scmp.ne.s32.totalorder %s81, %s82
    %p94 = scmp.eq.s32.totalorder %s16, 3
    %p95 = por %p93, %p94
    %p97 = scmp.ne.s32.totalorder %s82, %s96
    %p98 = scmp.eq.s32.totalorder %s16, 0
    %p99 = por %p97, %p98
    %s101 = sadd.s32 %s100, 1
    %p104 = scmp.eq.s32.totalorder %s10, 3
    %p105 = scmp.ne.s32.totalorder %s100, %s102
    %p106 = scmp.eq.s32.totalorder %s10, 0
    %p107 = por %p105, %p106
    %p108 = scmp.ne.s32.totalorder %s100, %s102
    %p109 = scmp.eq.s32.totalorder %s15, 3
    %p110 = por %p108, %p109
    %p111 = scmp.ne.s32.totalorder %s102, %s103
    %p112 = scmp.eq.s32.totalorder %s15, 0
    %p113 = por %p111, %p112
    %p114 = scmp.ne.s32.totalorder %s102, %s103
    %p115 = scmp.eq.s32.totalorder %s16, 3
    %p116 = por %p114, %p115
    %p118 = scmp.ne.s32.totalorder %s103, %s117
    %p119 = scmp.eq.s32.totalorder %s16, 0
    %p120 = por %p118, %p119
    %s121 = ssub.s32 %s17, %s29
    %s122 = ssub.s32 %s18, %s25
    %s123 = sor.u32 %s121, %s122
    %p124 = scmp.eq.s32.totalorder %s123, 0
    %s126 = sadd.s32 %s125, 1
    %s127 = scalar_select %p124, %s125, %s126
    %p130 = pneg %p124
    %p131 = scmp.eq.s32.totalorder %s10, 3
    %p132 = por %p130, %p131
    %p133 = scmp.ne.s32.totalorder %s125, %s128
    %p134 = scmp.eq.s32.totalorder %s10, 0
    %p135 = por %p133, %p134
    %p136 = scmp.ne.s32.totalorder %s125, %s128
    %p137 = scmp.eq.s32.totalorder %s15, 3
    %p138 = por %p136, %p137
    %p139 = scmp.ne.s32.totalorder %s128, %s129
    %p140 = scmp.eq.s32.totalorder %s15, 0
    %p141 = por %p139, %p140
    %p142 = scmp.ne.s32.totalorder %s128, %s129
    %p143 = scmp.eq.s32.totalorder %s16, 3
    %p144 = por %p142, %p143
    %p146 = scmp.ne.s32.totalorder %s129, %s145
    %p147 = scmp.eq.s32.totalorder %s16, 0
    %p148 = por %p146, %p147
    %p149 = scmp.le.s32.totalorder 1, %s10
    %p150 = scmp.lt.s32.totalorder %s10, 5
    %p151 = pnand %p149, %p150
    %p152 = pneg %p151
    // Predicated region
    $region9: #{unet_module_forward.2} parent=5 // pred_check
      _
    $region10: #{unet_module_forward.2} parent=5 // pred_check_branch
      %154 = sbr.rel (%p151) target = $region12
    $region11: #{unet_module_forward.2} parent=5 // pred_region
      %s155 = ssub.s32 %s10, 1
      // Predicated region
      $region13: #{unet_module_forward.2} parent=11 // pred_check
        %p156 = pneg %p71
      $region14: #{unet_module_forward.2} parent=11 // pred_check_branch
        %158 = sbr.rel (%p156) target = $region16
      $region15: #{unet_module_forward.2} parent=11 // pred_region
        _
      $region16: #{unet_module_forward.2} parent=11 // pred_fallthru
        _
      // Predicated region
      $region17: #{unet_module_forward.2} parent=11 // pred_check
        %p159 = pneg %p92
      $region18: #{unet_module_forward.2} parent=11 // pred_check_branch
        %161 = sbr.rel (%p159) target = $region20
      $region19: #{unet_module_forward.2} parent=11 // pred_region
        _
      $region20: #{unet_module_forward.2} parent=11 // pred_fallthru
        _
      // Predicated region
      $region21: #{unet_module_forward.2} parent=11 // pred_check
        %p162 = pneg %p113
      $region22: #{unet_module_forward.2} parent=11 // pred_check_branch
        %164 = sbr.rel (%p162) target = $region24
      $region23: #{unet_module_forward.2} parent=11 // pred_region
        _
      $region24: #{unet_module_forward.2} parent=11 // pred_fallthru
        _
    $region12: #{unet_module_forward.2} parent=5 // pred_fallthru
      _
    %p165 = scmp.lt.s32.totalorder %s10, 4
    // Predicated region
    $region25: #{unet_module_forward.2} parent=5 // pred_check
      %p166 = pneg %p165
    $region26: #{unet_module_forward.2} parent=5 // pred_check_branch
      %168 = sbr.rel (%p166) target = $region28
    $region27: #{unet_module_forward.2} parent=5 // pred_region
      // Predicated region
      $region29: #{unet_module_forward.2} parent=27 // pred_check
        %p169 = pneg %p44
      $region30: #{unet_module_forward.2} parent=27 // pred_check_branch
        %171 = sbr.rel (%p169) target = $region32
      $region31: #{unet_module_forward.2} parent=27 // pred_region
        %p172 = scmp.lt.s32.totalorder %s17, 1
        %s173 = scalar_select %p172, %s17, 1
        %p174 = scmp.lt.s32.totalorder %s18, 1
        %s175 = scalar_select %p174, %s18, 1
        %s176 = smul.addr %s175, 31
        %s177 = smul.addr %s173, 62
        %s178 = sadd.s32 %s176, %s177
        %s179 = smul.addr %s178, 8
        %s180 = scalar_lea.vmem %s0, %s179
      $region32: #{unet_module_forward.2} parent=27 // pred_fallthru
        _
    $region28: #{unet_module_forward.2} parent=5 // pred_fallthru
      _
    %p181 = scmp.le.s32.totalorder 1, %s10
    %p182 = scmp.lt.s32.totalorder %s10, 5
    %p183 = pnand %p181, %p182
    %p184 = pneg %p183
    // Predicated region
    $region33: #{unet_module_forward.2} parent=5 // pred_check
      _
    $region34: #{unet_module_forward.2} parent=5 // pred_check_branch
      %186 = sbr.rel (%p183) target = $region36
    $region35: #{unet_module_forward.2} parent=5 // pred_region
      %s187 = ssub.s32 %s10, 1
      %p188 = scmp.lt.s32.totalorder %s19, 1
      %s189 = scalar_select %p188, %s19, 1
      %p190 = scmp.lt.s32.totalorder %s20, 1
      %s191 = scalar_select %p190, %s20, 1
      %s192 = smul.addr %s191, 31
      %s193 = smul.addr %s189, 62
      %s194 = sadd.s32 %s192, %s193
      %s195 = smul.addr %s194, 8
      %s196 = scalar_lea.vmem %s0, %s195
      %p197 = pneg %p50
      %p198 = pneg %p47
      %p199 = pneg %p71
      %p200 = pneg %p68
      %p201 = pneg %p92
      %p202 = pneg %p89
      %p203 = pneg %p113
      %p204 = pneg %p110
      %p205 = pneg %p141
      %p206 = pneg %p138
      %p207 = scmp.lt.s32.totalorder %s19, 1
      %s208 = scalar_select %p207, %s19, 1
      %p209 = scmp.lt.s32.totalorder %s20, 1
      %s210 = scalar_select %p209, %s20, 1
      %s211 = smul.addr %s210, 24
      %s212 = smul.addr %s208, 48
      %s213 = sadd.s32 %s211, %s212
      %s214 = smul.addr %s213, 8
      %s215 = scalar_lea.vmem %s4, %s214
      %p216 = scmp.lt.s32.totalorder %s19, 1
      %s217 = scalar_select %p216, %s19, 1
      %p218 = scmp.lt.s32.totalorder %s20, 1
      %s219 = scalar_select %p218, %s20, 1
      %s220 = smul.addr %s219, 31
      %s221 = smul.addr %s217, 62
      %s222 = sadd.s32 %s220, %s221
      %s223 = smul.addr %s222, 8
      %s224 = scalar_lea.vmem %s0, %s223
      %p225 = scmp.lt.s32.totalorder %s19, 1
      %s226 = scalar_select %p225, %s19, 1
      %p227 = scmp.lt.s32.totalorder %s20, 1
      %s228 = scalar_select %p227, %s20, 1
      %s229 = smul.addr %s228, 24
      %s230 = smul.addr %s226, 48
      %s231 = sadd.s32 %s229, %s230
      %s232 = smul.addr %s231, 8
      %s233 = scalar_lea.vmem %s4, %s232
      %v234 = vld [vmem:[%s224] sm:$0xff]
      %v235 = vld [vmem:[%s224 + $0x8] sm:$0xff]
      %v236 = vld [vmem:[%s224 + $0x10] sm:$0xff]
      %v237 = vld [vmem:[%s224 + $0x18] sm:$0xff]
      %v238 = vld [vmem:[%s224 + $0x20] sm:$0xff]
      %v239 = vld [vmem:[%s224 + $0x28] sm:$0xff]
      %v240 = vld [vmem:[%s224 + $0x30] sm:$0xff]
      %v241 = vld [vmem:[%s224 + $0x38] sm:$0xff]
      %v242 = vld [vmem:[%s224 + $0x40] sm:$0xff]
      %v243 = vld [vmem:[%s224 + $0x48] sm:$0xff]
      %v244 = vld [vmem:[%s224 + $0x50] sm:$0xff]
      %v245 = vld [vmem:[%s224 + $0x58] sm:$0xff]
      %v246 = vld [vmem:[%s224 + $0x60] sm:$0xff]
      %v247 = vld [vmem:[%s224 + $0x68] sm:$0xff]
      %v248 = vld [vmem:[%s224 + $0x70] sm:$0xff]
      %v249 = vld [vmem:[%s224 + $0x78] sm:$0xff]
      %v250 = vld [vmem:[%s224 + $0x80] sm:$0xff]
      %v251 = vld [vmem:[%s224 + $0x88] sm:$0xff]
      %v252 = vld [vmem:[%s224 + $0x90] sm:$0xff]
      %v253 = vld [vmem:[%s224 + $0x98] sm:$0xff]
      %v254 = vld [vmem:[%s224 + $0xa0] sm:$0xff]
      %v255 = vld [vmem:[%s224 + $0xa8] sm:$0xff]
      %v256 = vld [vmem:[%s224 + $0xb0] sm:$0xff]
      %v257 = vld [vmem:[%s224 + $0xb8] sm:$0xff]
      %v258 = vld [vmem:[%s224 + $0xc0] sm:$0xff]
      %v259 = vld [vmem:[%s224 + $0xc8] sm:$0xff]
      %v260 = vld [vmem:[%s224 + $0xd0] sm:$0xff]
      %v261 = vld [vmem:[%s224 + $0xd8] sm:$0xff]
      %v262 = vld [vmem:[%s224 + $0xe0] sm:$0xff]
      %v263 = vld [vmem:[%s224 + $0xe8] sm:$0xff]
      %264 = vst [vmem:[#allocation2] sm:$0xff] %v234
      %265 = vst [vmem:[#allocation2 + $0x18] sm:$0xff] %v235
      %266 = vst [vmem:[#allocation2 + $0x30] sm:$0xff] %v236
      %267 = vst [vmem:[#allocation2 + $0x48] sm:$0xff] %v237
      %268 = vst [vmem:[#allocation2 + $0x60] sm:$0xff] %v238
      %269 = vst [vmem:[#allocation2 + $0x78] sm:$0xff] %v239
      %270 = vst [vmem:[#allocation2 + $0x90] sm:$0xff] %v240
      %271 = vst [vmem:[#allocation2 + $0xa8] sm:$0xff] %v241
      %272 = vst [vmem:[#allocation2 + $0xc0] sm:$0xff] %v242
      %273 = vst [vmem:[#allocation2 + $0xd8] sm:$0xff] %v243
      %274 = vst [vmem:[#allocation2 + $0xf0] sm:$0xff] %v244
      %275 = vst [vmem:[#allocation2 + $0x108] sm:$0xff] %v245
      %276 = vst [vmem:[#allocation2 + $0x120] sm:$0xff] %v246
      %277 = vst [vmem:[#allocation2 + $0x138] sm:$0xff] %v247
      %278 = vst [vmem:[#allocation2 + $0x150] sm:$0xff] %v248
      %279 = vst [vmem:[#allocation2 + $0x168] sm:$0xff] %v249
      %280 = vst [vmem:[#allocation2 + $0x180] sm:$0xff] %v250
      %281 = vst [vmem:[#allocation2 + $0x198] sm:$0xff] %v251
      %282 = vst [vmem:[#allocation2 + $0x1b0] sm:$0xff] %v252
      %283 = vst [vmem:[#allocation2 + $0x1c8] sm:$0xff] %v253
      %284 = vst [vmem:[#allocation2 + $0x1e0] sm:$0xff] %v254
      %285 = vst [vmem:[#allocation2 + $0x1f8] sm:$0xff] %v255
      %286 = vst [vmem:[#allocation2 + $0x210] sm:$0xff] %v256
      %287 = vst [vmem:[#allocation2 + $0x228] sm:$0xff] %v257
      %288 = vst [vmem:[#allocation2 + $0x240] sm:$0xff] %v258
      %289 = vst [vmem:[#allocation2 + $0x258] sm:$0xff] %v259
      %290 = vst [vmem:[#allocation2 + $0x270] sm:$0xff] %v260
      %291 = vst [vmem:[#allocation2 + $0x288] sm:$0xff] %v261
      %292 = vst [vmem:[#allocation2 + $0x2a0] sm:$0xff] %v262
      %293 = vst [vmem:[#allocation2 + $0x2b8] sm:$0xff] %v263
      %v294 = vld [vmem:[%s224 + $0x1] sm:$0xff]
      %v295 = vld [vmem:[%s224 + $0x9] sm:$0xff]
      %v296 = vld [vmem:[%s224 + $0x11] sm:$0xff]
      %v297 = vld [vmem:[%s224 + $0x19] sm:$0xff]
      %v298 = vld [vmem:[%s224 + $0x21] sm:$0xff]
      %v299 = vld [vmem:[%s224 + $0x29] sm:$0xff]
      %v300 = vld [vmem:[%s224 + $0x31] sm:$0xff]
      %v301 = vld [vmem:[%s224 + $0x39] sm:$0xff]
      %v302 = vld [vmem:[%s224 + $0x41] sm:$0xff]
      %v303 = vld [vmem:[%s224 + $0x49] sm:$0xff]
      %v304 = vld [vmem:[%s224 + $0x51] sm:$0xff]
      %v305 = vld [vmem:[%s224 + $0x59] sm:$0xff]
      %v306 = vld [vmem:[%s224 + $0x61] sm:$0xff]
      %v307 = vld [vmem:[%s224 + $0x69] sm:$0xff]
      %v308 = vld [vmem:[%s224 + $0x71] sm:$0xff]
      %v309 = vld [vmem:[%s224 + $0x79] sm:$0xff]
      %v310 = vld [vmem:[%s224 + $0x81] sm:$0xff]
      %v311 = vld [vmem:[%s224 + $0x89] sm:$0xff]
      %v312 = vld [vmem:[%s224 + $0x91] sm:$0xff]
      %v313 = vld [vmem:[%s224 + $0x99] sm:$0xff]
      %v314 = vld [vmem:[%s224 + $0xa1] sm:$0xff]
      %v315 = vld [vmem:[%s224 + $0xa9] sm:$0xff]
      %v316 = vld [vmem:[%s224 + $0xb1] sm:$0xff]
      %v317 = vld [vmem:[%s224 + $0xb9] sm:$0xff]
      %v318 = vld [vmem:[%s224 + $0xc1] sm:$0xff]
      %v319 = vld [vmem:[%s224 + $0xc9] sm:$0xff]
      %v320 = vld [vmem:[%s224 + $0xd1] sm:$0xff]
      %v321 = vld [vmem:[%s224 + $0xd9] sm:$0xff]
      %v322 = vld [vmem:[%s224 + $0xe1] sm:$0xff]
      %v323 = vld [vmem:[%s224 + $0xe9] sm:$0xff]
      %324 = vst [vmem:[#allocation2 + $0x8] sm:$0xff] %v294
      %325 = vst [vmem:[#allocation2 + $0x20] sm:$0xff] %v295
      %326 = vst [vmem:[#allocation2 + $0x38] sm:$0xff] %v296
      %327 = vst [vmem:[#allocation2 + $0x50] sm:$0xff] %v297
      %328 = vst [vmem:[#allocation2 + $0x68] sm:$0xff] %v298
      %329 = vst [vmem:[#allocation2 + $0x80] sm:$0xff] %v299
      %330 = vst [vmem:[#allocation2 + $0x98] sm:$0xff] %v300
      %331 = vst [vmem:[#allocation2 + $0xb0] sm:$0xff] %v301
      %332 = vst [vmem:[#allocation2 + $0xc8] sm:$0xff] %v302
      %333 = vst [vmem:[#allocation2 + $0xe0] sm:$0xff] %v303
      %334 = vst [vmem:[#allocation2 + $0xf8] sm:$0xff] %v304
      %335 = vst [vmem:[#allocation2 + $0x110] sm:$0xff] %v305
      %336 = vst [vmem:[#allocation2 + $0x128] sm:$0xff] %v306
      %337 = vst [vmem:[#allocation2 + $0x140] sm:$0xff] %v307
      %338 = vst [vmem:[#allocation2 + $0x158] sm:$0xff] %v308
      %339 = vst [vmem:[#allocation2 + $0x170] sm:$0xff] %v309
      %340 = vst [vmem:[#allocation2 + $0x188] sm:$0xff] %v310
      %341 = vst [vmem:[#allocation2 + $0x1a0] sm:$0xff] %v311
      %342 = vst [vmem:[#allocation2 + $0x1b8] sm:$0xff] %v312
      %343 = vst [vmem:[#allocation2 + $0x1d0] sm:$0xff] %v313
      %344 = vst [vmem:[#allocation2 + $0x1e8] sm:$0xff] %v314
      %345 = vst [vmem:[#allocation2 + $0x200] sm:$0xff] %v315
      %346 = vst [vmem:[#allocation2 + $0x218] sm:$0xff] %v316
      %347 = vst [vmem:[#allocation2 + $0x230] sm:$0xff] %v317
      %348 = vst [vmem:[#allocation2 + $0x248] sm:$0xff] %v318
      %349 = vst [vmem:[#allocation2 + $0x260] sm:$0xff] %v319
      %350 = vst [vmem:[#allocation2 + $0x278] sm:$0xff] %v320
      %351 = vst [vmem:[#allocation2 + $0x290] sm:$0xff] %v321
      %352 = vst [vmem:[#allocation2 + $0x2a8] sm:$0xff] %v322
      %353 = vst [vmem:[#allocation2 + $0x2c0] sm:$0xff] %v323
      %v354 = vld [vmem:[%s224 + $0x2] sm:$0xff]
      %v355 = vld [vmem:[%s224 + $0xa] sm:$0xff]
      %v356 = vld [vmem:[%s224 + $0x12] sm:$0xff]
      %v357 = vld [vmem:[%s224 + $0x1a] sm:$0xff]
      %v358 = vld [vmem:[%s224 + $0x22] sm:$0xff]
      %v359 = vld [vmem:[%s224 + $0x2a] sm:$0xff]
      %v360 = vld [vmem:[%s224 + $0x32] sm:$0xff]
      %v361 = vld [vmem:[%s224 + $0x3a] sm:$0xff]
      %v362 = vld [vmem:[%s224 + $0x42] sm:$0xff]
      %v363 = vld [vmem:[%s224 + $0x4a] sm:$0xff]
      %v364 = vld [vmem:[%s224 + $0x52] sm:$0xff]
      %v365 = vld [vmem:[%s224 + $0x5a] sm:$0xff]
      %v366 = vld [vmem:[%s224 + $0x62] sm:$0xff]
      %v367 = vld [vmem:[%s224 + $0x6a] sm:$0xff]
      %v368 = vld [vmem:[%s224 + $0x72] sm:$0xff]
      %v369 = vld [vmem:[%s224 + $0x7a] sm:$0xff]
      %v370 = vld [vmem:[%s224 + $0x82] sm:$0xff]
      %v371 = vld [vmem:[%s224 + $0x8a] sm:$0xff]
      %v372 = vld [vmem:[%s224 + $0x92] sm:$0xff]
      %v373 = vld [vmem:[%s224 + $0x9a] sm:$0xff]
      %v374 = vld [vmem:[%s224 + $0xa2] sm:$0xff]
      %v375 = vld [vmem:[%s224 + $0xaa] sm:$0xff]
      %v376 = vld [vmem:[%s224 + $0xb2] sm:$0xff]
      %v377 = vld [vmem:[%s224 + $0xba] sm:$0xff]
      %v378 = vld [vmem:[%s224 + $0xc2] sm:$0xff]
      %v379 = vld [vmem:[%s224 + $0xca] sm:$0xff]
      %v380 = vld [vmem:[%s224 + $0xd2] sm:$0xff]
      %v381 = vld [vmem:[%s224 + $0xda] sm:$0xff]
      %v382 = vld [vmem:[%s224 + $0xe2] sm:$0xff]
      %v383 = vld [vmem:[%s224 + $0xea] sm:$0xff]
      %384 = vst [vmem:[#allocation2 + $0x10] sm:$0xff] %v354
      %385 = vst [vmem:[#allocation2 + $0x28] sm:$0xff] %v355
      %386 = vst [vmem:[#allocation2 + $0x40] sm:$0xff] %v356
      %387 = vst [vmem:[#allocation2 + $0x58] sm:$0xff] %v357
      %388 = vst [vmem:[#allocation2 + $0x70] sm:$0xff] %v358
      %389 = vst [vmem:[#allocation2 + $0x88] sm:$0xff] %v359
      %390 = vst [vmem:[#allocation2 + $0xa0] sm:$0xff] %v360
      %391 = vst [vmem:[#allocation2 + $0xb8] sm:$0xff] %v361
      %392 = vst [vmem:[#allocation2 + $0xd0] sm:$0xff] %v362
      %393 = vst [vmem:[#allocation2 + $0xe8] sm:$0xff] %v363
      %394 = vst [vmem:[#allocation2 + $0x100] sm:$0xff] %v364
      %395 = vst [vmem:[#allocation2 + $0x118] sm:$0xff] %v365
      %396 = vst [vmem:[#allocation2 + $0x130] sm:$0xff] %v366
      %397 = vst [vmem:[#allocation2 + $0x148] sm:$0xff] %v367
      %398 = vst [vmem:[#allocation2 + $0x160] sm:$0xff] %v368
      %399 = vst [vmem:[#allocation2 + $0x178] sm:$0xff] %v369
      %400 = vst [vmem:[#allocation2 + $0x190] sm:$0xff] %v370
      %401 = vst [vmem:[#allocation2 + $0x1a8] sm:$0xff] %v371
      %402 = vst [vmem:[#allocation2 + $0x1c0] sm:$0xff] %v372
      %403 = vst [vmem:[#allocation2 + $0x1d8] sm:$0xff] %v373
      %404 = vst [vmem:[#allocation2 + $0x1f0] sm:$0xff] %v374
      %405 = vst [vmem:[#allocation2 + $0x208] sm:$0xff] %v375
      %406 = vst [vmem:[#allocation2 + $0x220] sm:$0xff] %v376
      %407 = vst [vmem:[#allocation2 + $0x238] sm:$0xff] %v377
      %408 = vst [vmem:[#allocation2 + $0x250] sm:$0xff] %v378
      %409 = vst [vmem:[#allocation2 + $0x268] sm:$0xff] %v379
      %410 = vst [vmem:[#allocation2 + $0x280] sm:$0xff] %v380
      %411 = vst [vmem:[#allocation2 + $0x298] sm:$0xff] %v381
      %412 = vst [vmem:[#allocation2 + $0x2b0] sm:$0xff] %v382
      %413 = vst [vmem:[#allocation2 + $0x2c8] sm:$0xff] %v383
      %v414 = vld [vmem:[#allocation2] sm:$0xff]
      %v415 = vld [vmem:[#allocation2 + $0x8] sm:$0xff]
      %v416 = vld [vmem:[#allocation2 + $0x10] sm:$0xff]
      %v417 = vld [vmem:[#allocation2 + $0x18] sm:$0xff]
      %v418 = vld [vmem:[#allocation2 + $0x20] sm:$0xff]
      %v419 = vld [vmem:[#allocation2 + $0x28] sm:$0xff]
      %v420 = vld [vmem:[#allocation2 + $0x30] sm:$0xff]
      %v421 = vld [vmem:[#allocation2 + $0x38] sm:$0xff]
      %v422 = vld [vmem:[#allocation2 + $0x40] sm:$0xff]
      %v423 = vld [vmem:[#allocation2 + $0x48] sm:$0xff]
      %v424 = vld [vmem:[#allocation2 + $0x50] sm:$0xff]
      %v425 = vld [vmem:[#allocation2 + $0x58] sm:$0xff]
      %v426 = vld [vmem:[#allocation2 + $0x60] sm:$0xff]
      %v427 = vld [vmem:[#allocation2 + $0x68] sm:$0xff]
      %v428 = vld [vmem:[#allocation2 + $0x70] sm:$0xff]
      %v429 = vld [vmem:[#allocation2 + $0x78] sm:$0xff]
      %v430 = vld [vmem:[#allocation2 + $0x80] sm:$0xff]
      %v431 = vld [vmem:[#allocation2 + $0x88] sm:$0xff]
      %v432 = vld [vmem:[#allocation2 + $0x90] sm:$0xff]
      %v433 = vld [vmem:[#allocation2 + $0x98] sm:$0xff]
      %v434 = vld [vmem:[#allocation2 + $0xa0] sm:$0xff]
      %v435 = vld [vmem:[#allocation2 + $0xa8] sm:$0xff]
      %v436 = vld [vmem:[#allocation2 + $0xb0] sm:$0xff]
      %v437 = vld [vmem:[#allocation2 + $0xb8] sm:$0xff]
      %v438 = vld [vmem:[#allocation2 + $0xc0] sm:$0xff]
      %v439 = vld [vmem:[#allocation2 + $0xc8] sm:$0xff]
      %v440 = vld [vmem:[#allocation2 + $0xd0] sm:$0xff]
      %v441 = vld [vmem:[#allocation2 + $0xd8] sm:$0xff]
      %v442 = vld [vmem:[#allocation2 + $0xe0] sm:$0xff]
      %v443 = vld [vmem:[#allocation2 + $0xe8] sm:$0xff]
      %v444 = vld [vmem:[#allocation2 + $0xf0] sm:$0xff]
      %v445 = vld [vmem:[#allocation2 + $0xf8] sm:$0xff]
      %v446 = vld [vmem:[#allocation2 + $0x100] sm:$0xff]
      %v447 = vld [vmem:[#allocation2 + $0x108] sm:$0xff]
      %v448 = vld [vmem:[#allocation2 + $0x110] sm:$0xff]
      %v449 = vld [vmem:[#allocation2 + $0x118] sm:$0xff]
      %v450 = vld [vmem:[#allocation2 + $0x120] sm:$0xff]
      %v451 = vld [vmem:[#allocation2 + $0x128] sm:$0xff]
      %v452 = vld [vmem:[#allocation2 + $0x130] sm:$0xff]
      %v453 = vld [vmem:[#allocation2 + $0x138] sm:$0xff]
      %v454 = vld [vmem:[#allocation2 + $0x140] sm:$0xff]
      %v455 = vld [vmem:[#allocation2 + $0x148] sm:$0xff]
      %v456 = vld [vmem:[#allocation2 + $0x150] sm:$0xff]
      %v457 = vld [vmem:[#allocation2 + $0x158] sm:$0xff]
      %v458 = vld [vmem:[#allocation2 + $0x160] sm:$0xff]
      %v459 = vld [vmem:[#allocation2 + $0x168] sm:$0xff]
      %v460 = vld [vmem:[#allocation2 + $0x170] sm:$0xff]
      %v461 = vld [vmem:[#allocation2 + $0x178] sm:$0xff]
      %v462 = vld [vmem:[#allocation2 + $0x180] sm:$0xff]
      %v463 = vld [vmem:[#allocation2 + $0x188] sm:$0xff]
      %v464 = vld [vmem:[#allocation2 + $0x190] sm:$0xff]
      %v465 = vld [vmem:[#allocation2 + $0x198] sm:$0xff]
      %v466 = vld [vmem:[#allocation2 + $0x1a0] sm:$0xff]
      %v467 = vld [vmem:[#allocation2 + $0x1a8] sm:$0xff]
      %v468 = vld [vmem:[#allocation2 + $0x1b0] sm:$0xff]
      %v469 = vld [vmem:[#allocation2 + $0x1b8] sm:$0xff]
      %v470 = vld [vmem:[#allocation2 + $0x1c0] sm:$0xff]
      %v471 = vld [vmem:[#allocation2 + $0x1c8] sm:$0xff]
      %v472 = vld [vmem:[#allocation2 + $0x1d0] sm:$0xff]
      %v473 = vld [vmem:[#allocation2 + $0x1d8] sm:$0xff]
      %v474 = vld [vmem:[#allocation2 + $0x1e0] sm:$0xff]
      %v475 = vld [vmem:[#allocation2 + $0x1e8] sm:$0xff]
      %v476 = vld [vmem:[#allocation2 + $0x1f0] sm:$0xff]
      %v477 = vld [vmem:[#allocation2 + $0x1f8] sm:$0xff]
      %v478 = vld [vmem:[#allocation2 + $0x200] sm:$0xff]
      %v479 = vld [vmem:[#allocation2 + $0x208] sm:$0xff]
      %v480 = vld [vmem:[#allocation2 + $0x210] sm:$0xff]
      %v481 = vld [vmem:[#allocation2 + $0x218] sm:$0xff]
      %v482 = vld [vmem:[#allocation2 + $0x220] sm:$0xff]
      %v483 = vld [vmem:[#allocation2 + $0x228] sm:$0xff]
      %v484 = vld [vmem:[#allocation2 + $0x230] sm:$0xff]
      %v485 = vld [vmem:[#allocation2 + $0x238] sm:$0xff]
      %v486 = vld [vmem:[%s1] sm:$0xff]
      %v487 = vld [vmem:[%s1 + $0x8] sm:$0xff]
      %v488 = vld [vmem:[%s1 + $0x10] sm:$0xff]
      %v489 = vld [vmem:[%s1 + $0x18] sm:$0xff]
      %v490 = vld [vmem:[%s1 + $0x20] sm:$0xff]
      %v491 = vld [vmem:[%s1 + $0x28] sm:$0xff]
      %v492 = vld [vmem:[%s1 + $0x30] sm:$0xff]
      %v493 = vld [vmem:[%s1 + $0x38] sm:$0xff]
      %v494 = vld [vmem:[%s1 + $0x40] sm:$0xff]
      %v495 = vld [vmem:[%s1 + $0x48] sm:$0xff]
      %v496 = vld [vmem:[%s1 + $0x50] sm:$0xff]
      %v497 = vld [vmem:[%s1 + $0x58] sm:$0xff]
      %v498 = vld [vmem:[%s1 + $0x60] sm:$0xff]
      %v499 = vld [vmem:[%s1 + $0x68] sm:$0xff]
      %v500 = vld [vmem:[%s1 + $0x70] sm:$0xff]
      %v501 = vld [vmem:[%s1 + $0x78] sm:$0xff]
      %v502 = vld [vmem:[%s1 + $0x80] sm:$0xff]
      %v503 = vld [vmem:[%s1 + $0x88] sm:$0xff]
      %v504 = vld [vmem:[%s1 + $0x90] sm:$0xff]
      %v505 = vld [vmem:[%s1 + $0x98] sm:$0xff]
      %v506 = vld [vmem:[%s1 + $0xa0] sm:$0xff]
      %v507 = vld [vmem:[%s1 + $0xa8] sm:$0xff]
      %v508 = vld [vmem:[%s1 + $0xb0] sm:$0xff]
      %v509 = vld [vmem:[%s1 + $0xb8] sm:$0xff]
      %v510 = vld [vmem:[%s1 + $0xc0] sm:$0xff]
      %v511 = vld [vmem:[%s1 + $0xc8] sm:$0xff]
      %v512 = vld [vmem:[%s1 + $0xd0] sm:$0xff]
      %v513 = vld [vmem:[%s1 + $0xd8] sm:$0xff]
      %v514 = vld [vmem:[%s1 + $0xe0] sm:$0xff]
      %v515 = vld [vmem:[%s1 + $0xe8] sm:$0xff]
      %v516 = vld [vmem:[%s1 + $0xf0] sm:$0xff]
      %v517 = vld [vmem:[%s1 + $0xf8] sm:$0xff]
      %v518 = vld [vmem:[%s1 + $0x100] sm:$0xff]
      %v519 = vld [vmem:[%s1 + $0x108] sm:$0xff]
      %v520 = vld [vmem:[%s1 + $0x110] sm:$0xff]
      %v521 = vld [vmem:[%s1 + $0x118] sm:$0xff]
      %v522 = vld [vmem:[%s1 + $0x120] sm:$0xff]
      %v523 = vld [vmem:[%s1 + $0x128] sm:$0xff]
      %v524 = vld [vmem:[%s1 + $0x130] sm:$0xff]
      %v525 = vld [vmem:[%s1 + $0x138] sm:$0xff]
      %v526 = vld [vmem:[%s1 + $0x140] sm:$0xff]
      %v527 = vld [vmem:[%s1 + $0x148] sm:$0xff]
      %v528 = vld [vmem:[%s1 + $0x150] sm:$0xff]
      %v529 = vld [vmem:[%s1 + $0x158] sm:$0xff]
      %v530 = vld [vmem:[%s1 + $0x160] sm:$0xff]
      %v531 = vld [vmem:[%s1 + $0x168] sm:$0xff]
      %v532 = vld [vmem:[%s1 + $0x170] sm:$0xff]
      %v533 = vld [vmem:[%s1 + $0x178] sm:$0xff]
      %534 = vmatprep.subr.mxu0 0.0
      %535 = vmatpush1.msra.mxu0 %v486
      %536 = vmatprep.subr.mxu0 0.0
      %537 = vmatpush1.msra.mxu0 %v487
      %538 = vmatprep.subr.mxu0 0.0
      %539 = vmatpush1.msra.mxu0 %v488
      %540 = vmatprep.subr.mxu0 0.0
      %541 = vmatpush1.msra.mxu0 %v489
      %542 = vmatprep.subr.mxu0 0.0
      %543 = vmatpush1.msra.mxu0 %v490
      %544 = vmatprep.subr.mxu0 0.0
      %545 = vmatpush1.msra.mxu0 %v491
      %546 = vmatprep.subr.mxu0 0.0
      %547 = vmatpush1.msra.mxu0 %v492
      %548 = vmatprep.subr.mxu0 0.0
      %549 = vmatpush1.msra.mxu0 %v493
      %550 = vmatprep.subr.mxu0 0.0
      %551 = vmatpush1.msra.mxu0 %v494
      %552 = vmatprep.subr.mxu0 0.0
      %553 = vmatpush1.msra.mxu0 %v495
      %554 = vmatprep.subr.mxu0 0.0
      %555 = vmatpush1.msra.mxu0 %v496
      %556 = vmatprep.subr.mxu0 0.0
      %557 = vmatpush1.msra.mxu0 %v497
      %558 = vmatprep.subr.mxu0 0.0
      %559 = vmatpush1.msra.mxu0 %v498
      %560 = vmatprep.subr.mxu0 0.0
      %561 = vmatpush1.msra.mxu0 %v499
      %562 = vmatprep.subr.mxu0 0.0
      %563 = vmatpush1.msra.mxu0 %v500
      %564 = vmatprep.subr.mxu0 0.0
      %565 = vmatpush1.msra.mxu0 %v501
      %566 = vmatprep.subr.mxu0 0.0
      %567 = vmatpush1.msra.mxu0 %v502
      %568 = vmatprep.subr.mxu0 0.0
      %569 = vmatpush1.msra.mxu0 %v503
      %570 = vmatprep.subr.mxu0 0.0
      %571 = vmatpush1.msra.mxu0 %v504
      %572 = vmatprep.subr.mxu0 0.0
      %573 = vmatpush1.msra.mxu0 %v505
      %574 = vmatprep.subr.mxu0 0.0
      %575 = vmatpush1.msra.mxu0 %v506
      %576 = vmatprep.subr.mxu0 0.0
      %577 = vmatpush1.msra.mxu0 %v507
      %578 = vmatprep.subr.mxu0 0.0
      %579 = vmatpush1.msra.mxu0 %v508
      %580 = vmatprep.subr.mxu0 0.0
      %581 = vmatpush1.msra.mxu0 %v509
      %582 = vmatprep.subr.mxu0 0.0
      %583 = vmatpush1.msra.mxu0 %v510
      %584 = vmatprep.subr.mxu0 0.0
      %585 = vmatpush1.msra.mxu0 %v511
      %586 = vmatprep.subr.mxu0 0.0
      %587 = vmatpush1.msra.mxu0 %v512
      %588 = vmatprep.subr.mxu0 0.0
      %589 = vmatpush1.msra.mxu0 %v513
      %590 = vmatprep.subr.mxu0 0.0
      %591 = vmatpush1.msra.mxu0 %v514
      %592 = vmatprep.subr.mxu0 0.0
      %593 = vmatpush1.msra.mxu0 %v515
      %594 = vmatprep.subr.mxu0 0.0
      %595 = vmatpush1.msra.mxu0 %v516
      %596 = vmatprep.subr.mxu0 0.0
      %597 = vmatpush1.msra.mxu0 %v517
      %598 = vmatprep.mubr.f32.mxu0 %v415
      %599 = vmatmul.mubr.f32.gmra.mrb[0].mxu0 %v414
      %v600 = vpop.f32.mrb[0].mxu0
      %v601 = vadd.f32 0.0, %v600
      %v602 = vpop.f32.mrb[0].mxu0
      %603 = vmatprep.mubr.f32.mxu0 %v418
      %604 = vmatmul.mubr.f32.gmra.mrb[0].mxu0 %v417
      %v605 = vpop.f32.mrb[0].mxu0
      %v606 = vadd.f32 0.0, %v605
      %v607 = vpop.f32.mrb[0].mxu0
      %608 = vmatprep.mubr.f32.mxu0 %v421
      %609 = vmatmul.mubr.f32.gmra.mrb[0].mxu0 %v420
      %v610 = vpop.f32.mrb[0].mxu0
      %v611 = vadd.f32 0.0, %v610
      %v612 = vpop.f32.mrb[0].mxu0
      %613 = vmatprep.mubr.f32.mxu0 %v424
      %614 = vmatmul.mubr.f32.gmra.mrb[0].mxu0 %v423
      %v615 = vpop.f32.mrb[0].mxu0
      %v616 = vadd.f32 0.0, %v615
      %v617 = vpop.f32.mrb[0].mxu0
      %618 = vmatprep.mubr.f32.mxu0 %v427
      %619 = vmatmul.mubr.f32.gmra.mrb[0].mxu0 %v426
      %v620 = vpop.f32.mrb[0].mxu0
      %v621 = vadd.f32 0.0, %v620
      %v622 = vpop.f32.mrb[0].mxu0
      %623 = vmatprep.mubr.f32.mxu0 %v430
      %624 = vmatmul.mubr.f32.gmra.mrb[0].mxu0 %v429
      %v625 = vpop.f32.mrb[0].mxu0
      %v626 = vadd.f32 0.0, %v625
      %v627 = vpop.f32.mrb[0].mxu0
      %628 = vmatprep.mubr.f32.mxu0 %v433
      %629 = vmatmul.mubr.f32.gmra.mrb[0].mxu0 %v432
      %v630 = vpop.f32.mrb[0].mxu0
      %v631 = vadd.f32 0.0, %v630
      %v632 = vpop.f32.mrb[0].mxu0
      %633 = vmatprep.mubr.f32.mxu0 %v436
      %634 = vmatmul.mubr.f32.gmra.mrb[0].mxu0 %v435
      %v635 = vpop.f32.mrb[0].mxu0
      %v636 = vadd.f32 0.0, %v635
      %v637 = vpop.f32.mrb[0].mxu0
      %638 = vmatprep.mubr.f32.mxu0 %v439
      %639 = vmatmul.mubr.f32.gmra.mrb[0].mxu0 %v438
      %v640 = vpop.f32.mrb[0].mxu0
      %v641 = vadd.f32 0.0, %v640
      %v642 = vpop.f32.mrb[0].mxu0
      %643 = vmatprep.mubr.f32.mxu0 %v442
      %644 = vmatmul.mubr.f32.gmra.mrb[0].mxu0 %v441
      %v645 = vpop.f32.mrb[0].mxu0
      %v646 = vadd.f32 0.0, %v645
      %v647 = vpop.f32.mrb[0].mxu0
      %648 = vmatprep.mubr.f32.mxu0 %v445
      %649 = vmatmul.mubr.f32.gmra.mrb[0].mxu0 %v444
      %v650 = vpop.f32.mrb[0].mxu0
      %v651 = vadd.f32 0.0, %v650
      %v652 = vpop.f32.mrb[0].mxu0
      %653 = vmatprep.mubr.f32.mxu0 %v448
      %654 = vmatmul.mubr.f32.gmra.mrb[0].mxu0 %v447
      %v655 = vpop.f32.mrb[0].mxu0
      %v656 = vadd.f32 0.0, %v655
      %v657 = vpop.f32.mrb[0].mxu0
      %658 = vmatprep.mubr.f32.mxu0 %v451
      %659 = vmatmul.mubr.f32.gmra.mrb[0].mxu0 %v450
      %v660 = vpop.f32.mrb[0].mxu0
      %v661 = vadd.f32 0.0, %v660
      %v662 = vpop.f32.mrb[0].mxu0
      %663 = vmatprep.mubr.f32.mxu0 %v454
      %664 = vmatmul.mubr.f32.gmra.mrb[0].mxu0 %v453
      %v665 = vpop.f32.mrb[0].mxu0
      %v666 = vadd.f32 0.0, %v665
      %v667 = vpop.f32.mrb[0].mxu0
      %668 = vmatprep.mubr.f32.mxu0 %v457
      %669 = vmatmul.mubr.f32.gmra.mrb[0].mxu0 %v456
      %v670 = vpop.f32.mrb[0].mxu0
      %v671 = vadd.f32 0.0, %v670
      %v672 = vpop.f32.mrb[0].mxu0
      %673 = vmatprep.mubr.f32.mxu0 %v460
      %674 = vmatmul.mubr.f32.gmra.mrb[0].mxu0 %v459
      %v675 = vpop.f32.mrb[0].mxu0
      %v676 = vadd.f32 0.0, %v675
      %v677 = vpop.f32.mrb[0].mxu0
      %678 = vmatprep.mubr.f32.mxu0 %v463
      %679 = vmatmul.mubr.f32.gmra.mrb[0].mxu0 %v462
      %v680 = vpop.f32.mrb[0].mxu0
      %v681 = vadd.f32 0.0, %v680
      %v682 = vpop.f32.mrb[0].mxu0
      %683 = vmatprep.mubr.f32.mxu0 %v466
      %684 = vmatmul.mubr.f32.gmra.mrb[0].mxu0 %v465
      %v685 = vpop.f32.mrb[0].mxu0
      %v686 = vadd.f32 0.0, %v685
      %v687 = vpop.f32.mrb[0].mxu0
      %688 = vmatprep.mubr.f32.mxu0 %v469
      %689 = vmatmul.mubr.f32.gmra.mrb[0].mxu0 %v468
      %v690 = vpop.f32.mrb[0].mxu0
      %v691 = vadd.f32 0.0, %v690
      %v692 = vpop.f32.mrb[0].mxu0
      %693 = vmatprep.mubr.f32.mxu0 %v472
      %694 = vmatmul.mubr.f32.gmra.mrb[0].mxu0 %v471
      %v695 = vpop.f32.mrb[0].mxu0
      %v696 = vadd.f32 0.0, %v695
      %v697 = vpop.f32.mrb[0].mxu0
      %698 = vmatprep.mubr.f32.mxu0 %v475
      %699 = vmatmul.mubr.f32.gmra.mrb[0].mxu0 %v474
      %v700 = vpop.f32.mrb[0].mxu0
      %v701 = vadd.f32 0.0, %v700
      %v702 = vpop.f32.mrb[0].mxu0
      %703 = vmatprep.mubr.f32.mxu0 %v478
      %704 = vmatmul.mubr.f32.gmra.mrb[0].mxu0 %v477
      %v705 = vpop.f32.mrb[0].mxu0
      %v706 = vadd.f32 0.0, %v705
      %v707 = vpop.f32.mrb[0].mxu0
      %708 = vmatprep.mubr.f32.mxu0 %v481
      %709 = vmatmul.mubr.f32.gmra.mrb[0].mxu0 %v480
      %v710 = vpop.f32.mrb[0].mxu0
      %v711 = vadd.f32 0.0, %v710
      %v712 = vpop.f32.mrb[0].mxu0
      %713 = vmatprep.mubr.f32.mxu0 %v484
      %714 = vmatmul.mubr.f32.gmra.mrb[0].mxu0 %v483
      %v715 = vpop.f32.mrb[0].mxu0
      %v716 = vadd.f32 0.0, %v715
      %v717 = vpop.f32.mrb[0].mxu0
      %718 = vdwg.mxu0
      %719 = vmatprep.subr.mxu0 0.0
      %720 = vmatpush1.msra.mxu0 %v518
      %721 = vmatprep.subr.mxu0 0.0
      %722 = vmatpush1.msra.mxu0 %v519
      %723 = vmatprep.subr.mxu0 0.0
      %724 = vmatpush1.msra.mxu0 %v520
      %725 = vmatprep.subr.mxu0 0.0
      %726 = vmatpush1.msra.mxu0 %v521
      %727 = vmatprep.subr.mxu0 0.0
      %728 = vmatpush1.msra.mxu0 %v522
      %729 = vmatprep.subr.mxu0 0.0
      %730 = vmatpush1.msra.mxu0 %v523
      %731 = vmatprep.subr.mxu0 0.0
      %732 = vmatpush1.msra.mxu0 %v524
      %733 = vmatprep.subr.mxu0 0.0
      %734 = vmatpush1.msra.mxu0 %v525
      %735 = vmatprep.subr.mxu0 0.0
      %736 = vmatpush1.msra.mxu0 %v526
      %737 = vmatprep.subr.mxu0 0.0
      %738 = vmatpush1.msra.mxu0 %v527
      %739 = vmatprep.subr.mxu0 0.0
      %740 = vmatpush1.msra.mxu0 %v528
      %741 = vmatprep.subr.mxu0 0.0
      %742 = vmatpush1.msra.mxu0 %v529
      %743 = vmatprep.subr.mxu0 0.0
      %744 = vmatpush1.msra.mxu0 %v530
      %745 = vmatprep.subr.mxu0 0.0
      %746 = vmatpush1.msra.mxu0 %v531
      %747 = vmatprep.subr.mxu0 0.0
      %748 = vmatpush1.msra.mxu0 %v532
      %749 = vmatprep.subr.mxu0 0.0
      %750 = vmatpush1.msra.mxu0 %v533
      %751 = vmatprep.subr.mxu0 0.0
      %752 = vmatpush1.msra.mxu0 0.0
      %753 = vmatprep.subr.mxu0 0.0
      %754 = vmatpush1.msra.mxu0 0.0
      %755 = vmatprep.subr.mxu0 0.0
      %756 = vmatpush1.msra.mxu0 0.0
      %757 = vmatprep.subr.mxu0 0.0
      %758 = vmatpush1.msra.mxu0 0.0
      %759 = vmatprep.subr.mxu0 0.0
      %760 = vmatpush1.msra.mxu0 0.0
      %761 = vmatprep.subr.mxu0 0.0
      %762 = vmatpush1.msra.mxu0 0.0
      %763 = vmatprep.subr.mxu0 0.0
      %764 = vmatpush1.msra.mxu0 0.0
      %765 = vmatprep.subr.mxu0 0.0
      %766 = vmatpush1.msra.mxu0 0.0
      %767 = vmatprep.subr.mxu0 0.0
      %768 = vmatpush1.msra.mxu0 0.0
      %769 = vmatprep.subr.mxu0 0.0
      %770 = vmatpush1.msra.mxu0 0.0
      %771 = vmatprep.subr.mxu0 0.0
      %772 = vmatpush1.msra.mxu0 0.0
      %773 = vmatprep.subr.mxu0 0.0
      %774 = vmatpush1.msra.mxu0 0.0
      %775 = vmatprep.subr.mxu0 0.0
      %776 = vmatpush1.msra.mxu0 0.0
      %777 = vmatprep.subr.mxu0 0.0
      %778 = vmatpush1.msra.mxu0 0.0
      %779 = vmatprep.subr.mxu0 0.0
      %780 = vmatpush1.msra.mxu0 0.0
      %781 = vmatprep.subr.mxu0 0.0
      %782 = vmatpush1.msra.mxu0 0.0
      %783 = vmatprep.mubr.f32.mxu0 0.0
      %784 = vmatmul.mubr.f32.gmra.mrb[0].mxu0 %v416
      %v785 = vpop.f32.mrb[0].mxu0
      %v786 = vadd.f32 %v601, %v785
      %v787 = vpop.f32.mrb[0].mxu0
      %788 = vmatprep.mubr.f32.mxu0 0.0
      %789 = vmatmul.mubr.f32.gmra.mrb[0].mxu0 %v419
      %v790 = vpop.f32.mrb[0].mxu0
      %v791 = vadd.f32 %v606, %v790
      %v792 = vpop.f32.mrb[0].mxu0
      %793 = vmatprep.mubr.f32.mxu0 0.0
      %794 = vmatmul.mubr.f32.gmra.mrb[0].mxu0 %v422
      %v795 = vpop.f32.mrb[0].mxu0
      %v796 = vadd.f32 %v611, %v795
      %v797 = vpop.f32.mrb[0].mxu0
      %798 = vmatprep.mubr.f32.mxu0 0.0
      %799 = vmatmul.mubr.f32.gmra.mrb[0].mxu0 %v425
      %v800 = vpop.f32.mrb[0].mxu0
      %v801 = vadd.f32 %v616, %v800
      %v802 = vpop.f32.mrb[0].mxu0
      %803 = vmatprep.mubr.f32.mxu0 0.0
      %804 = vmatmul.mubr.f32.gmra.mrb[0].mxu0 %v428
      %v805 = vpop.f32.mrb[0].mxu0
      %v806 = vadd.f32 %v621, %v805
      %v807 = vpop.f32.mrb[0].mxu0
      %808 = vmatprep.mubr.f32.mxu0 0.0
      %809 = vmatmul.mubr.f32.gmra.mrb[0].mxu0 %v431
      %v810 = vpop.f32.mrb[0].mxu0
      %v811 = vadd.f32 %v626, %v810
      %v812 = vpop.f32.mrb[0].mxu0
      %813 = vmatprep.mubr.f32.mxu0 0.0
      %814 = vmatmul.mubr.f32.gmra.mrb[0].mxu0 %v434
      %v815 = vpop.f32.mrb[0].mxu0
      %v816 = vadd.f32 %v631, %v815
      %v817 = vpop.f32.mrb[0].mxu0
      %818 = vmatprep.mubr.f32.mxu0 0.0
      %819 = vmatmul.mubr.f32.gmra.mrb[0].mxu0 %v437
      %v820 = vpop.f32.mrb[0].mxu0
      %v821 = vadd.f32 %v636, %v820
      %v822 = vpop.f32.mrb[0].mxu0
      %823 = vmatprep.mubr.f32.mxu0 0.0
      %824 = vmatmul.mubr.f32.gmra.mrb[0].mxu0 %v440
      %v825 = vpop.f32.mrb[0].mxu0
      %v826 = vadd.f32 %v641, %v825
      %v827 = vpop.f32.mrb[0].mxu0
      %828 = vmatprep.mubr.f32.mxu0 0.0
      %829 = vmatmul.mubr.f32.gmra.mrb[0].mxu0 %v443
      %v830 = vpop.f32.mrb[0].mxu0
      %v831 = vadd.f32 %v646, %v830
      %v832 = vpop.f32.mrb[0].mxu0
      %833 = vmatprep.mubr.f32.mxu0 0.0
      %834 = vmatmul.mubr.f32.gmra.mrb[0].mxu0 %v446
      %v835 = vpop.f32.mrb[0].mxu0
      %v836 = vadd.f32 %v651, %v835
      %v837 = vpop.f32.mrb[0].mxu0
      %838 = vmatprep.mubr.f32.mxu0 0.0
      %839 = vmatmul.mubr.f32.gmra.mrb[0].mxu0 %v449
      %v840 = vpop.f32.mrb[0].mxu0
      %v841 = vadd.f32 %v656, %v840
      %v842 = vpop.f32.mrb[0].mxu0
      %843 = vmatprep.mubr.f32.mxu0 0.0
      %844 = vmatmul.mubr.f32.gmra.mrb[0].mxu0 %v452
      %v845 = vpop.f32.mrb[0].mxu0
      %v846 = vadd.f32 %v661, %v845
      %v847 = vpop.f32.mrb[0].mxu0
      %848 = vmatprep.mubr.f32.mxu0 0.0
      %849 = vmatmul.mubr.f32.gmra.mrb[0].mxu0 %v455
      %v850 = vpop.f32.mrb[0].mxu0
      %v851 = vadd.f32 %v666, %v850
      %v852 = vpop.f32.mrb[0].mxu0
      %853 = vmatprep.mubr.f32.mxu0 0.0
      %854 = vmatmul.mubr.f32.gmra.mrb[0].mxu0 %v458
      %v855 = vpop.f32.mrb[0].mxu0
      %v856 = vadd.f32 %v671, %v855
      %v857 = vpop.f32.mrb[0].mxu0
      %858 = vmatprep.mubr.f32.mxu0 0.0
      %859 = vmatmul.mubr.f32.gmra.mrb[0].mxu0 %v461
      %v860 = vpop.f32.mrb[0].mxu0
      %v861 = vadd.f32 %v676, %v860
      %v862 = vpop.f32.mrb[0].mxu0
      %863 = vmatprep.mubr.f32.mxu0 0.0
      %864 = vmatmul.mubr.f32.gmra.mrb[0].mxu0 %v464
      %v865 = vpop.f32.mrb[0].mxu0
      %v866 = vadd.f32 %v681, %v865
      %v867 = vpop.f32.mrb[0].mxu0
      %868 = vmatprep.mubr.f32.mxu0 0.0
      %869 = vmatmul.mubr.f32.gmra.mrb[0].mxu0 %v467
      %v870 = vpop.f32.mrb[0].mxu0
      %v871 = vadd.f32 %v686, %v870
      %v872 = vpop.f32.mrb[0].mxu0
      %873 = vmatprep.mubr.f32.mxu0 0.0
      %874 = vmatmul.mubr.f32.gmra.mrb[0].mxu0 %v470
      %v875 = vpop.f32.mrb[0].mxu0
      %v876 = vadd.f32 %v691, %v875
      %v877 = vpop.f32.mrb[0].mxu0
      %878 = vmatprep.mubr.f32.mxu0 0.0
      %879 = vmatmul.mubr.f32.gmra.mrb[0].mxu0 %v473
      %v880 = vpop.f32.mrb[0].mxu0
      %v881 = vadd.f32 %v696, %v880
      %v882 = vpop.f32.mrb[0].mxu0
      %883 = vmatprep.mubr.f32.mxu0 0.0
      %884 = vmatmul.mubr.f32.gmra.mrb[0].mxu0 %v476
      %v885 = vpop.f32.mrb[0].mxu0
      %v886 = vadd.f32 %v701, %v885
      %v887 = vpop.f32.mrb[0].mxu0
      %888 = vmatprep.mubr.f32.mxu0 0.0
      %889 = vmatmul.mubr.f32.gmra.mrb[0].mxu0 %v479
      %v890 = vpop.f32.mrb[0].mxu0
      %v891 = vadd.f32 %v706, %v890
      %v892 = vpop.f32.mrb[0].mxu0
      %893 = vmatprep.mubr.f32.mxu0 0.0
      %894 = vmatmul.mubr.f32.gmra.mrb[0].mxu0 %v482
      %v895 = vpop.f32.mrb[0].mxu0
      %v896 = vadd.f32 %v711, %v895
      %v897 = vpop.f32.mrb[0].mxu0
      %898 = vmatprep.mubr.f32.mxu0 0.0
      %899 = vmatmul.mubr.f32.gmra.mrb[0].mxu0 %v485
      %v900 = vpop.f32.mrb[0].mxu0
      %v901 = vadd.f32 %v716, %v900
      %v902 = vpop.f32.mrb[0].mxu0
      %903 = vdwg.mxu0
      %904 = vst [vmem:[#allocation3] sm:$0xff] %v786
      %905 = vst [vmem:[#allocation3 + $0x8] sm:$0xff] %v791
      %906 = vst [vmem:[#allocation3 + $0x10] sm:$0xff] %v796
      %907 = vst [vmem:[#allocation3 + $0x18] sm:$0xff] %v801
      %908 = vst [vmem:[#allocation3 + $0x20] sm:$0xff] %v806
      %909 = vst [vmem:[#allocation3 + $0x28] sm:$0xff] %v811
      %910 = vst [vmem:[#allocation3 + $0x30] sm:$0xff] %v816
      %911 = vst [vmem:[#allocation3 + $0x38] sm:$0xff] %v821
      %912 = vst [vmem:[#allocation3 + $0x40] sm:$0xff] %v826
      %913 = vst [vmem:[#allocation3 + $0x48] sm:$0xff] %v831
      %914 = vst [vmem:[#allocation3 + $0x50] sm:$0xff] %v836
      %915 = vst [vmem:[#allocation3 + $0x58] sm:$0xff] %v841
      %916 = vst [vmem:[#allocation3 + $0x60] sm:$0xff] %v846
      %917 = vst [vmem:[#allocation3 + $0x68] sm:$0xff] %v851
      %918 = vst [vmem:[#allocation3 + $0x70] sm:$0xff] %v856
      %919 = vst [vmem:[#allocation3 + $0x78] sm:$0xff] %v861
      %920 = vst [vmem:[#allocation3 + $0x80] sm:$0xff] %v866
      %921 = vst [vmem:[#allocation3 + $0x88] sm:$0xff] %v871
      %922 = vst [vmem:[#allocation3 + $0x90] sm:$0xff] %v876
      %923 = vst [vmem:[#allocation3 + $0x98] sm:$0xff] %v881
      %924 = vst [vmem:[#allocation3 + $0xa0] sm:$0xff] %v886
      %925 = vst [vmem:[#allocation3 + $0xa8] sm:$0xff] %v891
      %926 = vst [vmem:[#allocation3 + $0xb0] sm:$0xff] %v896
      %927 = vst [vmem:[#allocation3 + $0xb8] sm:$0xff] %v901
      %v928 = vld [vmem:[#allocation3] sm:$0xff]
      %v929 = vld [vmem:[#allocation3 + $0x8] sm:$0xff]
      %v930 = vld [vmem:[#allocation3 + $0x10] sm:$0xff]
      %v931 = vld [vmem:[#allocation3 + $0x18] sm:$0xff]
      %v932 = vld [vmem:[#allocation3 + $0x20] sm:$0xff]
      %v933 = vld [vmem:[#allocation3 + $0x28] sm:$0xff]
      %v934 = vld [vmem:[#allocation3 + $0x30] sm:$0xff]
      %v935 = vld [vmem:[#allocation3 + $0x38] sm:$0xff]
      %v936 = vld [vmem:[#allocation3 + $0x40] sm:$0xff]
      %v937 = vld [vmem:[#allocation3 + $0x48] sm:$0xff]
      %v938 = vld [vmem:[#allocation3 + $0x50] sm:$0xff]
      %v939 = vld [vmem:[#allocation3 + $0x58] sm:$0xff]
      %v940 = vld [vmem:[#allocation3 + $0x60] sm:$0xff]
      %v941 = vld [vmem:[#allocation3 + $0x68] sm:$0xff]
      %v942 = vld [vmem:[#allocation3 + $0x70] sm:$0xff]
      %v943 = vld [vmem:[#allocation3 + $0x78] sm:$0xff]
      %v944 = vld [vmem:[#allocation3 + $0x80] sm:$0xff]
      %v945 = vld [vmem:[#allocation3 + $0x88] sm:$0xff]
      %v946 = vld [vmem:[#allocation3 + $0x90] sm:$0xff]
      %v947 = vld [vmem:[#allocation3 + $0x98] sm:$0xff]
      %v948 = vld [vmem:[#allocation3 + $0xa0] sm:$0xff]
      %v949 = vld [vmem:[#allocation3 + $0xa8] sm:$0xff]
      %v950 = vld [vmem:[#allocation3 + $0xb0] sm:$0xff]
      %v951 = vld [vmem:[#allocation3 + $0xb8] sm:$0xff]
      %v952 = vld [vmem:[#allocation2 + $0x48] sm:$0xff]
      %v953 = vld [vmem:[#allocation2 + $0x50] sm:$0xff]
      %v954 = vld [vmem:[#allocation2 + $0x58] sm:$0xff]
      %v955 = vld [vmem:[#allocation2 + $0x60] sm:$0xff]
      %v956 = vld [vmem:[#allocation2 + $0x68] sm:$0xff]
      %v957 = vld [vmem:[#allocation2 + $0x70] sm:$0xff]
      %v958 = vld [vmem:[#allocation2 + $0x78] sm:$0xff]
      %v959 = vld [vmem:[#allocation2 + $0x80] sm:$0xff]
      %v960 = vld [vmem:[#allocation2 + $0x88] sm:$0xff]
      %v961 = vld [vmem:[#allocation2 + $0x90] sm:$0xff]
      %v962 = vld [vmem:[#allocation2 + $0x98] sm:$0xff]
      %v963 = vld [vmem:[#allocation2 + $0xa0] sm:$0xff]
      %v964 = vld [vmem:[#allocation2 + $0xa8] sm:$0xff]
      %v965 = vld [vmem:[#allocation2 + $0xb0] sm:$0xff]
      %v966 = vld [vmem:[#allocation2 + $0xb8] sm:$0xff]
      %v967 = vld [vmem:[#allocation2 + $0xc0] sm:$0xff]
      %v968 = vld [vmem:[#allocation2 + $0xc8] sm:$0xff]
      %v969 = vld [vmem:[#allocation2 + $0xd0] sm:$0xff]
      %v970 = vld [vmem:[#allocation2 + $0xd8] sm:$0xff]
      %v971 = vld [vmem:[#allocation2 + $0xe0] sm:$0xff]
      %v972 = vld [vmem:[#allocation2 + $0xe8] sm:$0xff]
      %v973 = vld [vmem:[#allocation2 + $0xf0] sm:$0xff]
      %v974 = vld [vmem:[#allocation2 + $0xf8] sm:$0xff]
      %v975 = vld [vmem:[#allocation2 + $0x100] sm:$0xff]
      %v976 = vld [vmem:[#allocation2 + $0x108] sm:$0xff]
      %v977 = vld [vmem:[#allocation2 + $0x110] sm:$0xff]
      %v978 = vld [vmem:[#allocation2 + $0x118] sm:$0xff]
      %v979 = vld [vmem:[#allocation2 + $0x120] sm:$0xff]
      %v980 = vld [vmem:[#allocation2 + $0x128] sm:$0xff]
      %v981 = vld [vmem:[#allocation2 + $0x130] sm:$0xff]
      %v982 = vld [vmem:[#allocation2 + $0x138] sm:$0xff]
      %v983 = vld [vmem:[#allocation2 + $0x140] sm:$0xff]
      %v984 = vld [vmem:[#allocation2 + $0x148] sm:$0xff]
      %v985 = vld [vmem:[#allocation2 + $0x150] sm:$0xff]
      %v986 = vld [vmem:[#allocation2 + $0x158] sm:$0xff]
      %v987 = vld [vmem:[#allocation2 + $0x160] sm:$0xff]
      %v988 = vld [vmem:[#allocation2 + $0x168] sm:$0xff]
      %v989 = vld [vmem:[#allocation2 + $0x170] sm:$0xff]
      %v990 = vld [vmem:[#allocation2 + $0x178] sm:$0xff]
      %v991 = vld [vmem:[#allocation2 + $0x180] sm:$0xff]
      %v992 = vld [vmem:[#allocation2 + $0x188] sm:$0xff]
      %v993 = vld [vmem:[#allocation2 + $0x190] sm:$0xff]
      %v994 = vld [vmem:[#allocation2 + $0x198] sm:$0xff]
      %v995 = vld [vmem:[#allocation2 + $0x1a0] sm:$0xff]
      %v996 = vld [vmem:[#allocation2 + $0x1a8] sm:$0xff]
      %v997 = vld [vmem:[#allocation2 + $0x1b0] sm:$0xff]
      %v998 = vld [vmem:[#allocation2 + $0x1b8] sm:$0xff]
      %v999 = vld [vmem:[#allocation2 + $0x1c0] sm:$0xff]
      %v1000 = vld [vmem:[#allocation2 + $0x1c8] sm:$0xff]
      %v1001 = vld [vmem:[#allocation2 + $0x1d0] sm:$0xff]
      %v1002 = vld [vmem:[#allocation2 + $0x1d8] sm:$0xff]
      %v1003 = vld [vmem:[#allocation2 + $0x1e0] sm:$0xff]
      %v1004 = vld [vmem:[#allocation2 + $0x1e8] sm:$0xff]
      %v1005 = vld [vmem:[#allocation2 + $0x1f0] sm:$0xff]
      %v1006 = vld [vmem:[#allocation2 + $0x1f8] sm:$0xff]
      %v1007 = vld [vmem:[#allocation2 + $0x200] sm:$0xff]
      %v1008 = vld [vmem:[#allocation2 + $0x208] sm:$0xff]
      %v1009 = vld [vmem:[#allocation2 + $0x210] sm:$0xff]
      %v1010 = vld [vmem:[#allocation2 + $0x218] sm:$0xff]
      %v1011 = vld [vmem:[#allocation2 + $0x220] sm:$0xff]
      %v1012 = vld [vmem:[#allocation2 + $0x228] sm:$0xff]
      %v1013 = vld [vmem:[#allocation2 + $0x230] sm:$0xff]
      %v1014 = vld [vmem:[#allocation2 + $0x238] sm:$0xff]
      %v1015 = vld [vmem:[#allocation2 + $0x240] sm:$0xff]
      %v1016 = vld [vmem:[#allocation2 + $0x248] sm:$0xff]
      %v1017 = vld [vmem:[#allocation2 + $0x250] sm:$0xff]
      %v1018 = vld [vmem:[#allocation2 + $0x258] sm:$0xff]
      %v1019 = vld [vmem:[#allocation2 + $0x260] sm:$0xff]
      %v1020 = vld [vmem:[#allocation2 + $0x268] sm:$0xff]
      %v1021 = vld [vmem:[#allocation2 + $0x270] sm:$0xff]
      %v1022 = vld [vmem:[#allocation2 + $0x278] sm:$0xff]
      %v1023 = vld [vmem:[#allocation2 + $0x280] sm:$0xff]
      %s1024 = scalar_lea.vmem %s1, 384
      %v1025 = vld [vmem:[%s1024] sm:$0xff]
      %v1026 = vld [vmem:[%s1024 + $0x8] sm:$0xff]
      %v1027 = vld [vmem:[%s1024 + $0x10] sm:$0xff]
      %v1028 = vld [vmem:[%s1024 + $0x18] sm:$0xff]
      %v1029 = vld [vmem:[%s1024 + $0x20] sm:$0xff]
      %v1030 = vld [vmem:[%s1024 + $0x28] sm:$0xff]
      %v1031 = vld [vmem:[%s1024 + $0x30] sm:$0xff]
      %v1032 = vld [vmem:[%s1024 + $0x38] sm:$0xff]
      %v1033 = vld [vmem:[%s1024 + $0x40] sm:$0xff]
      %v1034 = vld [vmem:[%s1024 + $0x48] sm:$0xff]
      %v1035 = vld [vmem:[%s1024 + $0x50] sm:$0xff]
      %v1036 = vld [vmem:[%s1024 + $0x58] sm:$0xff]
      %v1037 = vld [vmem:[%s1024 + $0x60] sm:$0xff]
      %v1038 = vld [vmem:[%s1024 + $0x68] sm:$0xff]
      %v1039 = vld [vmem:[%s1024 + $0x70] sm:$0xff]
      %v1040 = vld [vmem:[%s1024 + $0x78] sm:$0xff]
      %v1041 = vld [vmem:[%s1024 + $0x80] sm:$0xff]
      %v1042 = vld [vmem:[%s1024 + $0x88] sm:$0xff]
      %v1043 = vld [vmem:[%s1024 + $0x90] sm:$0xff]
      %v1044 = vld [vmem:[%s1024 + $0x98] sm:$0xff]
      %v1045 = vld [vmem:[%s1024 + $0xa0] sm:$0xff]
      %v1046 = vld [vmem:[%s1024 + $0xa8] sm:$0xff]
      %v1047 = vld [vmem:[%s1024 + $0xb0] sm:$0xff]
      %v1048 = vld [vmem:[%s1024 + $0xb8] sm:$0xff]
      %v1049 = vld [vmem:[%s1024 + $0xc0] sm:$0xff]
      %v1050 = vld [vmem:[%s1024 + $0xc8] sm:$0xff]
      %v1051 = vld [vmem:[%s1024 + $0xd0] sm:$0xff]
      %v1052 = vld [vmem:[%s1024 + $0xd8] sm:$0xff]
      %v1053 = vld [vmem:[%s1024 + $0xe0] sm:$0xff]
      %v1054 = vld [vmem:[%s1024 + $0xe8] sm:$0xff]
      %v1055 = vld [vmem:[%s1024 + $0xf0] sm:$0xff]
      %v1056 = vld [vmem:[%s1024 + $0xf8] sm:$0xff]
      %v1057 = vld [vmem:[%s1024 + $0x100] sm:$0xff]
      %v1058 = vld [vmem:[%s1024 + $0x108] sm:$0xff]
      %v1059 = vld [vmem:[%s1024 + $0x110] sm:$0xff]
      %v1060 = vld [vmem:[%s1024 + $0x118] sm:$0xff]
      %v1061 = vld [vmem:[%s1024 + $0x120] sm:$0xff]
      %v1062 = vld [vmem:[%s1024 + $0x128] sm:$0xff]
      %v1063 = vld [vmem:[%s1024 + $0x130] sm:$0xff]
      %v1064 = vld [vmem:[%s1024 + $0x138] sm:$0xff]
      %v1065 = vld [vmem:[%s1024 + $0x140] sm:$0xff]
      %v1066 = vld [vmem:[%s1024 + $0x148] sm:$0xff]
      %v1067 = vld [vmem:[%s1024 + $0x150] sm:$0xff]
      %v1068 = vld [vmem:[%s1024 + $0x158] sm:$0xff]
      %v1069 = vld [vmem:[%s1024 + $0x160] sm:$0xff]
      %v1070 = vld [vmem:[%s1024 + $0x168] sm:$0xff]
      %v1071 = vld [vmem:[%s1024 + $0x170] sm:$0xff]
      %v1072 = vld [vmem:[%s1024 + $0x178] sm:$0xff]
      %1073 = vmatprep.subr.mxu0 0.0
      %1074 = vmatpush1.msra.mxu0 %v1025
      %1075 = vmatprep.subr.mxu0 0.0
      %1076 = vmatpush1.msra.mxu0 %v1026
      %1077 = vmatprep.subr.mxu0 0.0
      %1078 = vmatpush1.msra.mxu0 %v1027
      %1079 = vmatprep.subr.mxu0 0.0
      %1080 = vmatpush1.msra.mxu0 %v1028
      %1081 = vmatprep.subr.mxu0 0.0
      %1082 = vmatpush1.msra.mxu0 %v1029
      %1083 = vmatprep.subr.mxu0 0.0
      %1084 = vmatpush1.msra.mxu0 %v1030
      %1085 = vmatprep.subr.mxu0 0.0
      %1086 = vmatpush1.msra.mxu0 %v1031
      %1087 = vmatprep.subr.mxu0 0.0
      %1088 = vmatpush1.msra.mxu0 %v1032
      %1089 = vmatprep.subr.mxu0 0.0
      %1090 = vmatpush1.msra.mxu0 %v1033
      %1091 = vmatprep.subr.mxu0 0.0
      %1092 = vmatpush1.msra.mxu0 %v1034
      %1093 = vmatprep.subr.mxu0 0.0
      %1094 = vmatpush1.msra.mxu0 %v1035
      %1095 = vmatprep.subr.mxu0 0.0
      %1096 = vmatpush1.msra.mxu0 %v1036
      %1097 = vmatprep.subr.mxu0 0.0
      %1098 = vmatpush1.msra.mxu0 %v1037
      %1099 = vmatprep.subr.mxu0 0.0
      %1100 = vmatpush1.msra.mxu0 %v1038
      %1101 = vmatprep.subr.mxu0 0.0
      %1102 = vmatpush1.msra.mxu0 %v1039
      %1103 = vmatprep.subr.mxu0 0.0
      %1104 = vmatpush1.msra.mxu0 %v1040
      %1105 = vmatprep.subr.mxu0 0.0
      %1106 = vmatpush1.msra.mxu0 %v1041
      %1107 = vmatprep.subr.mxu0 0.0
      %1108 = vmatpush1.msra.mxu0 %v1042
      %1109 = vmatprep.subr.mxu0 0.0
      %1110 = vmatpush1.msra.mxu0 %v1043
      %1111 = vmatprep.subr.mxu0 0.0
      %1112 = vmatpush1.msra.mxu0 %v1044
      %1113 = vmatprep.subr.mxu0 0.0
      %1114 = vmatpush1.msra.mxu0 %v1045
      %1115 = vmatprep.subr.mxu0 0.0
      %1116 = vmatpush1.msra.mxu0 %v1046
      %1117 = vmatprep.subr.mxu0 0.0
      %1118 = vmatpush1.msra.mxu0 %v1047
      %1119 = vmatprep.subr.mxu0 0.0
      %1120 = vmatpush1.msra.mxu0 %v1048
      %1121 = vmatprep.subr.mxu0 0.0
      %1122 = vmatpush1.msra.mxu0 %v1049
      %1123 = vmatprep.subr.mxu0 0.0
      %1124 = vmatpush1.msra.mxu0 %v1050
      %1125 = vmatprep.subr.mxu0 0.0
      %1126 = vmatpush1.msra.mxu0 %v1051
      %1127 = vmatprep.subr.mxu0 0.0
      %1128 = vmatpush1.msra.mxu0 %v1052
      %1129 = vmatprep.subr.mxu0 0.0
      %1130 = vmatpush1.msra.mxu0 %v1053
      %1131 = vmatprep.subr.mxu0 0.0
      %1132 = vmatpush1.msra.mxu0 %v1054
      %1133 = vmatprep.subr.mxu0 0.0
      %1134 = vmatpush1.msra.mxu0 %v1055
      %1135 = vmatprep.subr.mxu0 0.0
      %1136 = vmatpush1.msra.mxu0 %v1056
      %1137 = vmatprep.mubr.f32.mxu0 %v953
      %1138 = vmatmul.mubr.f32.gmra.mrb[0].mxu0 %v952
      %v1139 = vpop.f32.mrb[0].mxu0
      %v1140 = vadd.f32 0.0, %v1139
      %v1141 = vpop.f32.mrb[0].mxu0
      %1142 = vmatprep.mubr.f32.mxu0 %v956
      %1143 = vmatmul.mubr.f32.gmra.mrb[0].mxu0 %v955
      %v1144 = vpop.f32.mrb[0].mxu0
      %v1145 = vadd.f32 0.0, %v1144
      %v1146 = vpop.f32.mrb[0].mxu0
      %1147 = vmatprep.mubr.f32.mxu0 %v959
      %1148 = vmatmul.mubr.f32.gmra.mrb[0].mxu0 %v958
      %v1149 = vpop.f32.mrb[0].mxu0
      %v1150 = vadd.f32 0.0, %v1149
      %v1151 = vpop.f32.mrb[0].mxu0
      %1152 = vmatprep.mubr.f32.mxu0 %v962
      %1153 = vmatmul.mubr.f32.gmra.mrb[0].mxu0 %v961
      %v1154 = vpop.f32.mrb[0].mxu0
      %v1155 = vadd.f32 0.0, %v1154
      %v1156 = vpop.f32.mrb[0].mxu0
      %1157 = vmatprep.mubr.f32.mxu0 %v965
      %1158 = vmatmul.mubr.f32.gmra.mrb[0].mxu0 %v964
      %v1159 = vpop.f32.mrb[0].mxu0
      %v1160 = vadd.f32 0.0, %v1159
      %v1161 = vpop.f32.mrb[0].mxu0
      %1162 = vmatprep.mubr.f32.mxu0 %v968
      %1163 = vmatmul.mubr.f32.gmra.mrb[0].mxu0 %v967
      %v1164 = vpop.f32.mrb[0].mxu0
      %v1165 = vadd.f32 0.0, %v1164
      %v1166 = vpop.f32.mrb[0].mxu0
      %1167 = vmatprep.mubr.f32.mxu0 %v971
      %1168 = vmatmul.mubr.f32.gmra.mrb[0].mxu0 %v970
      %v1169 = vpop.f32.mrb[0].mxu0
      %v1170 = vadd.f32 0.0, %v1169
      %v1171 = vpop.f32.mrb[0].mxu0
      %1172 = vmatprep.mubr.f32.mxu0 %v974
      %1173 = vmatmul.mubr.f32.gmra.mrb[0].mxu0 %v973
      %v1174 = vpop.f32.mrb[0].mxu0
      %v1175 = vadd.f32 0.0, %v1174
      %v1176 = vpop.f32.mrb[0].mxu0
      %1177 = vmatprep.mubr.f32.mxu0 %v977
      %1178 = vmatmul.mubr.f32.gmra.mrb[0].mxu0 %v976
      %v1179 = vpop.f32.mrb[0].mxu0
      %v1180 = vadd.f32 0.0, %v1179
      %v1181 = vpop.f32.mrb[0].mxu0
      %1182 = vmatprep.mubr.f32.mxu0 %v980
      %1183 = vmatmul.mubr.f32.gmra.mrb[0].mxu0 %v979
      %v1184 = vpop.f32.mrb[0].mxu0
      %v1185 = vadd.f32 0.0, %v1184
      %v1186 = vpop.f32.mrb[0].mxu0
      %1187 = vmatprep.mubr.f32.mxu0 %v983
      %1188 = vmatmul.mubr.f32.gmra.mrb[0].mxu0 %v982
      %v1189 = vpop.f32.mrb[0].mxu0
      %v1190 = vadd.f32 0.0, %v1189
      %v1191 = vpop.f32.mrb[0].mxu0
      %1192 = vmatprep.mubr.f32.mxu0 %v986
      %1193 = vmatmul.mubr.f32.gmra.mrb[0].mxu0 %v985
      %v1194 = vpop.f32.mrb[0].mxu0
      %v1195 = vadd.f32 0.0, %v1194
      %v1196 = vpop.f32.mrb[0].mxu0
      %1197 = vmatprep.mubr.f32.mxu0 %v989
      %1198 = vmatmul.mubr.f32.gmra.mrb[0].mxu0 %v988
      %v1199 = vpop.f32.mrb[0].mxu0
      %v1200 = vadd.f32 0.0, %v1199
      %v1201 = vpop.f32.mrb[0].mxu0
      %1202 = vmatprep.mubr.f32.mxu0 %v992
      %1203 = vmatmul.mubr.f32.gmra.mrb[0].mxu0 %v991
      %v1204 = vpop.f32.mrb[0].mxu0
      %v1205 = vadd.f32 0.0, %v1204
      %v1206 = vpop.f32.mrb[0].mxu0
      %1207 = vmatprep.mubr.f32.mxu0 %v995
      %1208 = vmatmul.mubr.f32.gmra.mrb[0].mxu0 %v994
      %v1209 = vpop.f32.mrb[0].mxu0
      %v1210 = vadd.f32 0.0, %v1209
      %v1211 = vpop.f32.mrb[0].mxu0
      %1212 = vmatprep.mubr.f32.mxu0 %v998
      %1213 = vmatmul.mubr.f32.gmra.mrb[0].mxu0 %v997
      %v1214 = vpop.f32.mrb[0].mxu0
      %v1215 = vadd.f32 0.0, %v1214
      %v1216 = vpop.f32.mrb[0].mxu0
      %1217 = vmatprep.mubr.f32.mxu0 %v1001
      %1218 = vmatmul.mubr.f32.gmra.mrb[0].mxu0 %v1000
      %v1219 = vpop.f32.mrb[0].mxu0
      %v1220 = vadd.f32 0.0, %v1219
      %v1221 = vpop.f32.mrb[0].mxu0
      %1222 = vmatprep.mubr.f32.mxu0 %v1004
      %1223 = vmatmul.mubr.f32.gmra.mrb[0].mxu0 %v1003
      %v1224 = vpop.f32.mrb[0].mxu0
      %v1225 = vadd.f32 0.0, %v1224
      %v1226 = vpop.f32.mrb[0].mxu0
      %1227 = vmatprep.mubr.f32.mxu0 %v1007
      %1228 = vmatmul.mubr.f32.gmra.mrb[0].mxu0 %v1006
      %v1229 = vpop.f32.mrb[0].mxu0
      %v1230 = vadd.f32 0.0, %v1229
      %v1231 = vpop.f32.mrb[0].mxu0
      %1232 = vmatprep.mubr.f32.mxu0 %v1010
      %1233 = vmatmul.mubr.f32.gmra.mrb[0].mxu0 %v1009
      %v1234 = vpop.f32.mrb[0].mxu0
      %v1235 = vadd.f32 0.0, %v1234
      %v1236 = vpop.f32.mrb[0].mxu0
      %1237 = vmatprep.mubr.f32.mxu0 %v1013
      %1238 = vmatmul.mubr.f32.gmra.mrb[0].mxu0 %v1012
      %v1239 = vpop.f32.mrb[0].mxu0
      %v1240 = vadd.f32 0.0, %v1239
      %v1241 = vpop.f32.mrb[0].mxu0
      %1242 = vmatprep.mubr.f32.mxu0 %v1016
      %1243 = vmatmul.mubr.f32.gmra.mrb[0].mxu0 %v1015
      %v1244 = vpop.f32.mrb[0].mxu0
      %v1245 = vadd.f32 0.0, %v1244
      %v1246 = vpop.f32.mrb[0].mxu0
      %1247 = vmatprep.mubr.f32.mxu0 %v1019
      %1248 = vmatmul.mubr.f32.gmra.mrb[0].mxu0 %v1018
      %v1249 = vpop.f32.mrb[0].mxu0
      %v1250 = vadd.f32 0.0, %v1249
      %v1251 = vpop.f32.mrb[0].mxu0
      %1252 = vmatprep.mubr.f32.mxu0 %v1022
      %1253 = vmatmul.mubr.f32.gmra.mrb[0].mxu0 %v1021
      %v1254 = vpop.f32.mrb[0].mxu0
      %v1255 = vadd.f32 0.0, %v1254
      %v1256 = vpop.f32.mrb[0].mxu0
      %1257 = vdwg.mxu0
      %1258 = vmatprep.subr.mxu0 0.0
      %1259 = vmatpush1.msra.mxu0 %v1057
      %1260 = vmatprep.subr.mxu0 0.0
      %1261 = vmatpush1.msra.mxu0 %v1058
      %1262 = vmatprep.subr.mxu0 0.0
      %1263 = vmatpush1.msra.mxu0 %v1059
      %1264 = vmatprep.subr.mxu0 0.0
      %1265 = vmatpush1.msra.mxu0 %v1060
      %1266 = vmatprep.subr.mxu0 0.0
      %1267 = vmatpush1.msra.mxu0 %v1061
      %1268 = vmatprep.subr.mxu0 0.0
      %1269 = vmatpush1.msra.mxu0 %v1062
      %1270 = vmatprep.subr.mxu0 0.0
      %1271 = vmatpush1.msra.mxu0 %v1063
      %1272 = vmatprep.subr.mxu0 0.0
      %1273 = vmatpush1.msra.mxu0 %v1064
      %1274 = vmatprep.subr.mxu0 0.0
      %1275 = vmatpush1.msra.mxu0 %v1065
      %1276 = vmatprep.subr.mxu0 0.0
      %1277 = vmatpush1.msra.mxu0 %v1066
      %1278 = vmatprep.subr.mxu0 0.0
      %1279 = vmatpush1.msra.mxu0 %v1067
      %1280 = vmatprep.subr.mxu0 0.0
      %1281 = vmatpush1.msra.mxu0 %v1068
      %1282 = vmatprep.subr.mxu0 0.0
      %1283 = vmatpush1.msra.mxu0 %v1069
      %1284 = vmatprep.subr.mxu0 0.0
      %1285 = vmatpush1.msra.mxu0 %v1070
      %1286 = vmatprep.subr.mxu0 0.0
      %1287 = vmatpush1.msra.mxu0 %v1071
      %1288 = vmatprep.subr.mxu0 0.0
      %1289 = vmatpush1.msra.mxu0 %v1072
      %1290 = vmatprep.subr.mxu0 0.0
      %1291 = vmatpush1.msra.mxu0 0.0
      %1292 = vmatprep.subr.mxu0 0.0
      %1293 = vmatpush1.msra.mxu0 0.0
      %1294 = vmatprep.subr.mxu0 0.0
      %1295 = vmatpush1.msra.mxu0 0.0
      %1296 = vmatprep.subr.mxu0 0.0
      %1297 = vmatpush1.msra.mxu0 0.0
      %1298 = vmatprep.subr.mxu0 0.0
      %1299 = vmatpush1.msra.mxu0 0.0
      %1300 = vmatprep.subr.mxu0 0.0
      %1301 = vmatpush1.msra.mxu0 0.0
      %1302 = vmatprep.subr.mxu0 0.0
      %1303 = vmatpush1.msra.mxu0 0.0
      %1304 = vmatprep.subr.mxu0 0.0
      %1305 = vmatpush1.msra.mxu0 0.0
      %1306 = vmatprep.subr.mxu0 0.0
      %1307 = vmatpush1.msra.mxu0 0.0
      %1308 = vmatprep.subr.mxu0 0.0
      %1309 = vmatpush1.msra.mxu0 0.0
      %1310 = vmatprep.subr.mxu0 0.0
      %1311 = vmatpush1.msra.mxu0 0.0
      %1312 = vmatprep.subr.mxu0 0.0
      %1313 = vmatpush1.msra.mxu0 0.0
      %1314 = vmatprep.subr.mxu0 0.0
      %1315 = vmatpush1.msra.mxu0 0.0
      %1316 = vmatprep.subr.mxu0 0.0
      %1317 = vmatpush1.msra.mxu0 0.0
      %1318 = vmatprep.subr.mxu0 0.0
      %1319 = vmatpush1.msra.mxu0 0.0
      %1320 = vmatprep.subr.mxu0 0.0
      %1321 = vmatpush1.msra.mxu0 0.0
      %1322 = vmatprep.mubr.f32.mxu0 0.0
      %1323 = vmatmul.mubr.f32.gmra.mrb[0].mxu0 %v954
      %v1324 = vpop.f32.mrb[0].mxu0
      %v1325 = vadd.f32 %v1140, %v1324
      %v1326 = vpop.f32.mrb[0].mxu0
      %1327 = vmatprep.mubr.f32.mxu0 0.0
      %1328 = vmatmul.mubr.f32.gmra.mrb[0].mxu0 %v957
      %v1329 = vpop.f32.mrb[0].mxu0
      %v1330 = vadd.f32 %v1145, %v1329
      %v1331 = vpop.f32.mrb[0].mxu0
      %1332 = vmatprep.mubr.f32.mxu0 0.0
      %1333 = vmatmul.mubr.f32.gmra.mrb[0].mxu0 %v960
      %v1334 = vpop.f32.mrb[0].mxu0
      %v1335 = vadd.f32 %v1150, %v1334
      %v1336 = vpop.f32.mrb[0].mxu0
      %1337 = vmatprep.mubr.f32.mxu0 0.0
      %1338 = vmatmul.mubr.f32.gmra.mrb[0].mxu0 %v963
      %v1339 = vpop.f32.mrb[0].mxu0
      %v1340 = vadd.f32 %v1155, %v1339
      %v1341 = vpop.f32.mrb[0].mxu0
      %1342 = vmatprep.mubr.f32.mxu0 0.0
      %1343 = vmatmul.mubr.f32.gmra.mrb[0].mxu0 %v966
      %v1344 = vpop.f32.mrb[0].mxu0
      %v1345 = vadd.f32 %v1160, %v1344
      %v1346 = vpop.f32.mrb[0].mxu0
      %1347 = vmatprep.mubr.f32.mxu0 0.0
      %1348 = vmatmul.mubr.f32.gmra.mrb[0].mxu0 %v969
      %v1349 = vpop.f32.mrb[0].mxu0
      %v1350 = vadd.f32 %v1165, %v1349
      %v1351 = vpop.f32.mrb[0].mxu0
      %1352 = vmatprep.mubr.f32.mxu0 0.0
      %1353 = vmatmul.mubr.f32.gmra.mrb[0].mxu0 %v972
      %v1354 = vpop.f32.mrb[0].mxu0
      %v1355 = vadd.f32 %v1170, %v1354
      %v1356 = vpop.f32.mrb[0].mxu0
      %1357 = vmatprep.mubr.f32.mxu0 0.0
      %1358 = vmatmul.mubr.f32.gmra.mrb[0].mxu0 %v975
      %v1359 = vpop.f32.mrb[0].mxu0
      %v1360 = vadd.f32 %v1175, %v1359
      %v1361 = vpop.f32.mrb[0].mxu0
      %1362 = vmatprep.mubr.f32.mxu0 0.0
      %1363 = vmatmul.mubr.f32.gmra.mrb[0].mxu0 %v978
      %v1364 = vpop.f32.mrb[0].mxu0
      %v1365 = vadd.f32 %v1180, %v1364
      %v1366 = vpop.f32.mrb[0].mxu0
      %1367 = vmatprep.mubr.f32.mxu0 0.0
      %1368 = vmatmul.mubr.f32.gmra.mrb[0].mxu0 %v981
      %v1369 = vpop.f32.mrb[0].mxu0
      %v1370 = vadd.f32 %v1185, %v1369
      %v1371 = vpop.f32.mrb[0].mxu0
      %1372 = vmatprep.mubr.f32.mxu0 0.0
      %1373 = vmatmul.mubr.f32.gmra.mrb[0].mxu0 %v984
      %v1374 = vpop.f32.mrb[0].mxu0
      %v1375 = vadd.f32 %v1190, %v1374
      %v1376 = vpop.f32.mrb[0].mxu0
      %1377 = vmatprep.mubr.f32.mxu0 0.0
      %1378 = vmatmul.mubr.f32.gmra.mrb[0].mxu0 %v987
      %v1379 = vpop.f32.mrb[0].mxu0
      %v1380 = vadd.f32 %v1195, %v1379
      %v1381 = vpop.f32.mrb[0].mxu0
      %1382 = vmatprep.mubr.f32.mxu0 0.0
      %1383 = vmatmul.mubr.f32.gmra.mrb[0].mxu0 %v990
      %v1384 = vpop.f32.mrb[0].mxu0
      %v1385 = vadd.f32 %v1200, %v1384
      %v1386 = vpop.f32.mrb[0].mxu0
      %1387 = vmatprep.mubr.f32.mxu0 0.0
      %1388 = vmatmul.mubr.f32.gmra.mrb[0].mxu0 %v993
      %v1389 = vpop.f32.mrb[0].mxu0
      %v1390 = vadd.f32 %v1205, %v1389
      %v1391 = vpop.f32.mrb[0].mxu0
      %1392 = vmatprep.mubr.f32.mxu0 0.0
      %1393 = vmatmul.mubr.f32.gmra.mrb[0].mxu0 %v996
      %v1394 = vpop.f32.mrb[0].mxu0
      %v1395 = vadd.f32 %v1210, %v1394
      %v1396 = vpop.f32.mrb[0].mxu0
      %1397 = vmatprep.mubr.f32.mxu0 0.0
      %1398 = vmatmul.mubr.f32.gmra.mrb[0].mxu0 %v999
      %v1399 = vpop.f32.mrb[0].mxu0
      %v1400 = vadd.f32 %v1215, %v1399
      %v1401 = vpop.f32.mrb[0].mxu0
      %1402 = vmatprep.mubr.f32.mxu0 0.0
      %1403 = vmatmul.mubr.f32.gmra.mrb[0].mxu0 %v1002
      %v1404 = vpop.f32.mrb[0].mxu0
      %v1405 = vadd.f32 %v1220, %v1404
      %v1406 = vpop.f32.mrb[0].mxu0
      %1407 = vmatprep.mubr.f32.mxu0 0.0
      %1408 = vmatmul.mubr.f32.gmra.mrb[0].mxu0 %v1005
      %v1409 = vpop.f32.mrb[0].mxu0
      %v1410 = vadd.f32 %v1225, %v1409
      %v1411 = vpop.f32.mrb[0].mxu0
      %1412 = vmatprep.mubr.f32.mxu0 0.0
      %1413 = vmatmul.mubr.f32.gmra.mrb[0].mxu0 %v1008
      %v1414 = vpop.f32.mrb[0].mxu0
      %v1415 = vadd.f32 %v1230, %v1414
      %v1416 = vpop.f32.mrb[0].mxu0
      %1417 = vmatprep.mubr.f32.mxu0 0.0
      %1418 = vmatmul.mubr.f32.gmra.mrb[0].mxu0 %v1011
      %v1419 = vpop.f32.mrb[0].mxu0
      %v1420 = vadd.f32 %v1235, %v1419
      %v1421 = vpop.f32.mrb[0].mxu0
      %1422 = vmatprep.mubr.f32.mxu0 0.0
      %1423 = vmatmul.mubr.f32.gmra.mrb[0].mxu0 %v1014
      %v1424 = vpop.f32.mrb[0].mxu0
      %v1425 = vadd.f32 %v1240, %v1424
      %v1426 = vpop.f32.mrb[0].mxu0
      %1427 = vmatprep.mubr.f32.mxu0 0.0
      %1428 = vmatmul.mubr.f32.gmra.mrb[0].mxu0 %v1017
      %v1429 = vpop.f32.mrb[0].mxu0
      %v1430 = vadd.f32 %v1245, %v1429
      %v1431 = vpop.f32.mrb[0].mxu0
      %1432 = vmatprep.mubr.f32.mxu0 0.0
      %1433 = vmatmul.mubr.f32.gmra.mrb[0].mxu0 %v1020
      %v1434 = vpop.f32.mrb[0].mxu0
      %v1435 = vadd.f32 %v1250, %v1434
      %v1436 = vpop.f32.mrb[0].mxu0
      %1437 = vmatprep.mubr.f32.mxu0 0.0
      %1438 = vmatmul.mubr.f32.gmra.mrb[0].mxu0 %v1023
      %v1439 = vpop.f32.mrb[0].mxu0
      %v1440 = vadd.f32 %v1255, %v1439
      %v1441 = vpop.f32.mrb[0].mxu0
      %1442 = vdwg.mxu0
      %v1443 = vadd.f32 %v928, %v1325
      %v1444 = vadd.f32 %v929, %v1330
      %v1445 = vadd.f32 %v930, %v1335
      %v1446 = vadd.f32 %v931, %v1340
      %v1447 = vadd.f32 %v932, %v1345
      %v1448 = vadd.f32 %v933, %v1350
      %v1449 = vadd.f32 %v934, %v1355
      %v1450 = vadd.f32 %v935, %v1360
      %v1451 = vadd.f32 %v936, %v1365
      %v1452 = vadd.f32 %v937, %v1370
      %v1453 = vadd.f32 %v938, %v1375
      %v1454 = vadd.f32 %v939, %v1380
      %v1455 = vadd.f32 %v940, %v1385
      %v1456 = vadd.f32 %v941, %v1390
      %v1457 = vadd.f32 %v942, %v1395
      %v1458 = vadd.f32 %v943, %v1400
      %v1459 = vadd.f32 %v944, %v1405
      %v1460 = vadd.f32 %v945, %v1410
      %v1461 = vadd.f32 %v946, %v1415
      %v1462 = vadd.f32 %v947, %v1420
      %v1463 = vadd.f32 %v948, %v1425
      %v1464 = vadd.f32 %v949, %v1430
      %v1465 = vadd.f32 %v950, %v1435
      %v1466 = vadd.f32 %v951, %v1440
      %1467 = vst [vmem:[#allocation3] sm:$0xff] %v1443
      %1468 = vst [vmem:[#allocation3 + $0x8] sm:$0xff] %v1444
      %1469 = vst [vmem:[#allocation3 + $0x10] sm:$0xff] %v1445
      %1470 = vst [vmem:[#allocation3 + $0x18] sm:$0xff] %v1446
      %1471 = vst [vmem:[#allocation3 + $0x20] sm:$0xff] %v1447
      %1472 = vst [vmem:[#allocation3 + $0x28] sm:$0xff] %v1448
      %1473 = vst [vmem:[#allocation3 + $0x30] sm:$0xff] %v1449
      %1474 = vst [vmem:[#allocation3 + $0x38] sm:$0xff] %v1450
      %1475 = vst [vmem:[#allocation3 + $0x40] sm:$0xff] %v1451
      %1476 = vst [vmem:[#allocation3 + $0x48] sm:$0xff] %v1452
      %1477 = vst [vmem:[#allocation3 + $0x50] sm:$0xff] %v1453
      %1478 = vst [vmem:[#allocation3 + $0x58] sm:$0xff] %v1454
      %1479 = vst [vmem:[#allocation3 + $0x60] sm:$0xff] %v1455
      %1480 = vst [vmem:[#allocation3 + $0x68] sm:$0xff] %v1456
      %1481 = vst [vmem:[#allocation3 + $0x70] sm:$0xff] %v1457
      %1482 = vst [vmem:[#allocation3 + $0x78] sm:$0xff] %v1458
      %1483 = vst [vmem:[#allocation3 + $0x80] sm:$0xff] %v1459
      %1484 = vst [vmem:[#allocation3 + $0x88] sm:$0xff] %v1460
      %1485 = vst [vmem:[#allocation3 + $0x90] sm:$0xff] %v1461
      %1486 = vst [vmem:[#allocation3 + $0x98] sm:$0xff] %v1462
      %1487 = vst [vmem:[#allocation3 + $0xa0] sm:$0xff] %v1463
      %1488 = vst [vmem:[#allocation3 + $0xa8] sm:$0xff] %v1464
      %1489 = vst [vmem:[#allocation3 + $0xb0] sm:$0xff] %v1465
      %1490 = vst [vmem:[#allocation3 + $0xb8] sm:$0xff] %v1466
      %v1491 = vld [vmem:[#allocation3] sm:$0xff]
      %v1492 = vld [vmem:[#allocation3 + $0x8] sm:$0xff]
      %v1493 = vld [vmem:[#allocation3 + $0x10] sm:$0xff]
      %v1494 = vld [vmem:[#allocation3 + $0x18] sm:$0xff]
      %v1495 = vld [vmem:[#allocation3 + $0x20] sm:$0xff]
      %v1496 = vld [vmem:[#allocation3 + $0x28] sm:$0xff]
      %v1497 = vld [vmem:[#allocation3 + $0x30] sm:$0xff]
      %v1498 = vld [vmem:[#allocation3 + $0x38] sm:$0xff]
      %v1499 = vld [vmem:[#allocation3 + $0x40] sm:$0xff]
      %v1500 = vld [vmem:[#allocation3 + $0x48] sm:$0xff]
      %v1501 = vld [vmem:[#allocation3 + $0x50] sm:$0xff]
      %v1502 = vld [vmem:[#allocation3 + $0x58] sm:$0xff]
      %v1503 = vld [vmem:[#allocation3 + $0x60] sm:$0xff]
      %v1504 = vld [vmem:[#allocation3 + $0x68] sm:$0xff]
      %v1505 = vld [vmem:[#allocation3 + $0x70] sm:$0xff]
      %v1506 = vld [vmem:[#allocation3 + $0x78] sm:$0xff]
      %v1507 = vld [vmem:[#allocation3 + $0x80] sm:$0xff]
      %v1508 = vld [vmem:[#allocation3 + $0x88] sm:$0xff]
      %v1509 = vld [vmem:[#allocation3 + $0x90] sm:$0xff]
      %v1510 = vld [vmem:[#allocation3 + $0x98] sm:$0xff]
      %v1511 = vld [vmem:[#allocation3 + $0xa0] sm:$0xff]
      %v1512 = vld [vmem:[#allocation3 + $0xa8] sm:$0xff]
      %v1513 = vld [vmem:[#allocation3 + $0xb0] sm:$0xff]
      %v1514 = vld [vmem:[#allocation3 + $0xb8] sm:$0xff]
      %v1515 = vld [vmem:[#allocation2 + $0x90] sm:$0xff]
      %v1516 = vld [vmem:[#allocation2 + $0x98] sm:$0xff]
      %v1517 = vld [vmem:[#allocation2 + $0xa0] sm:$0xff]
      %v1518 = vld [vmem:[#allocation2 + $0xa8] sm:$0xff]
      %v1519 = vld [vmem:[#allocation2 + $0xb0] sm:$0xff]
      %v1520 = vld [vmem:[#allocation2 + $0xb8] sm:$0xff]
      %v1521 = vld [vmem:[#allocation2 + $0xc0] sm:$0xff]
      %v1522 = vld [vmem:[#allocation2 + $0xc8] sm:$0xff]
      %v1523 = vld [vmem:[#allocation2 + $0xd0] sm:$0xff]
      %v1524 = vld [vmem:[#allocation2 + $0xd8] sm:$0xff]
      %v1525 = vld [vmem:[#allocation2 + $0xe0] sm:$0xff]
      %v1526 = vld [vmem:[#allocation2 + $0xe8] sm:$0xff]
      %v1527 = vld [vmem:[#allocation2 + $0xf0] sm:$0xff]
      %v1528 = vld [vmem:[#allocation2 + $0xf8] sm:$0xff]
      %v1529 = vld [vmem:[#allocation2 + $0x100] sm:$0xff]
      %v1530 = vld [vmem:[#allocation2 + $0x108] sm:$0xff]
      %v1531 = vld [vmem:[#allocation2 + $0x110] sm:$0xff]
      %v1532 = vld [vmem:[#allocation2 + $0x118] sm:$0xff]
      %v1533 = vld [vmem:[#allocation2 + $0x120] sm:$0xff]
      %v1534 = vld [vmem:[#allocation2 + $0x128] sm:$0xff]
      %v1535 = vld [vmem:[#allocation2 + $0x130] sm:$0xff]
      %v1536 = vld [vmem:[#allocation2 + $0x138] sm:$0xff]
      %v1537 = vld [vmem:[#allocation2 + $0x140] sm:$0xff]
      %v1538 = vld [vmem:[#allocation2 + $0x148] sm:$0xff]
      %v1539 = vld [vmem:[#allocation2 + $0x150] sm:$0xff]
      %v1540 = vld [vmem:[#allocation2 + $0x158] sm:$0xff]
      %v1541 = vld [vmem:[#allocation2 + $0x160] sm:$0xff]
      %v1542 = vld [vmem:[#allocation2 + $0x168] sm:$0xff]
      %v1543 = vld [vmem:[#allocation2 + $0x170] sm:$0xff]
      %v1544 = vld [vmem:[#allocation2 + $0x178] sm:$0xff]
      %v1545 = vld [vmem:[#allocation2 + $0x180] sm:$0xff]
      %v1546 = vld [vmem:[#allocation2 + $0x188] sm:$0xff]
      %v1547 = vld [vmem:[#allocation2 + $0x190] sm:$0xff]
      %v1548 = vld [vmem:[#allocation2 + $0x198] sm:$0xff]
      %v1549 = vld [vmem:[#allocation2 + $0x1a0] sm:$0xff]
      %v1550 = vld [vmem:[#allocation2 + $0x1a8] sm:$0xff]
      %v1551 = vld [vmem:[#allocation2 + $0x1b0] sm:$0xff]
      %v1552 = vld [vmem:[#allocation2 + $0x1b8] sm:$0xff]
      %v1553 = vld [vmem:[#allocation2 + $0x1c0] sm:$0xff]
      %v1554 = vld [vmem:[#allocation2 + $0x1c8] sm:$0xff]
      %v1555 = vld [vmem:[#allocation2 + $0x1d0] sm:$0xff]
      %v1556 = vld [vmem:[#allocation2 + $0x1d8] sm:$0xff]
      %v1557 = vld [vmem:[#allocation2 + $0x1e0] sm:$0xff]
      %v1558 = vld [vmem:[#allocation2 + $0x1e8] sm:$0xff]
      %v1559 = vld [vmem:[#allocation2 + $0x1f0] sm:$0xff]
      %v1560 = vld [vmem:[#allocation2 + $0x1f8] sm:$0xff]
      %v1561 = vld [vmem:[#allocation2 + $0x200] sm:$0xff]
      %v1562 = vld [vmem:[#allocation2 + $0x208] sm:$0xff]
      %v1563 = vld [vmem:[#allocation2 + $0x210] sm:$0xff]
      %v1564 = vld [vmem:[#allocation2 + $0x218] sm:$0xff]
      %v1565 = vld [vmem:[#allocation2 + $0x220] sm:$0xff]
      %v1566 = vld [vmem:[#allocation2 + $0x228] sm:$0xff]
      %v1567 = vld [vmem:[#allocation2 + $0x230] sm:$0xff]
      %v1568 = vld [vmem:[#allocation2 + $0x238] sm:$0xff]
      %v1569 = vld [vmem:[#allocation2 + $0x240] sm:$0xff]
      %v1570 = vld [vmem:[#allocation2 + $0x248] sm:$0xff]
      %v1571 = vld [vmem:[#allocation2 + $0x250] sm:$0xff]
      %v1572 = vld [vmem:[#allocation2 + $0x258] sm:$0xff]
      %v1573 = vld [vmem:[#allocation2 + $0x260] sm:$0xff]
      %v1574 = vld [vmem:[#allocation2 + $0x268] sm:$0xff]
      %v1575 = vld [vmem:[#allocation2 + $0x270] sm:$0xff]
      %v1576 = vld [vmem:[#allocation2 + $0x278] sm:$0xff]
      %v1577 = vld [vmem:[#allocation2 + $0x280] sm:$0xff]
      %v1578 = vld [vmem:[#allocation2 + $0x288] sm:$0xff]
      %v1579 = vld [vmem:[#allocation2 + $0x290] sm:$0xff]
      %v1580 = vld [vmem:[#allocation2 + $0x298] sm:$0xff]
      %v1581 = vld [vmem:[#allocation2 + $0x2a0] sm:$0xff]
      %v1582 = vld [vmem:[#allocation2 + $0x2a8] sm:$0xff]
      %v1583 = vld [vmem:[#allocation2 + $0x2b0] sm:$0xff]
      %v1584 = vld [vmem:[#allocation2 + $0x2b8] sm:$0xff]
      %v1585 = vld [vmem:[#allocation2 + $0x2c0] sm:$0xff]
      %v1586 = vld [vmem:[#allocation2 + $0x2c8] sm:$0xff]
      %s1587 = scalar_lea.vmem %s1, 768
      %v1588 = vld [vmem:[%s1587] sm:$0xff]
      %v1589 = vld [vmem:[%s1587 + $0x8] sm:$0xff]
      %v1590 = vld [vmem:[%s1587 + $0x10] sm:$0xff]
      %v1591 = vld [vmem:[%s1587 + $0x18] sm:$0xff]
      %v1592 = vld [vmem:[%s1587 + $0x20] sm:$0xff]
      %v1593 = vld [vmem:[%s1587 + $0x28] sm:$0xff]
      %v1594 = vld [vmem:[%s1587 + $0x30] sm:$0xff]
      %v1595 = vld [vmem:[%s1587 + $0x38] sm:$0xff]
      %v1596 = vld [vmem:[%s1587 + $0x40] sm:$0xff]
      %v1597 = vld [vmem:[%s1587 + $0x48] sm:$0xff]
      %v1598 = vld [vmem:[%s1587 + $0x50] sm:$0xff]
      %v1599 = vld [vmem:[%s1587 + $0x58] sm:$0xff]
      %v1600 = vld [vmem:[%s1587 + $0x60] sm:$0xff]
      %v1601 = vld [vmem:[%s1587 + $0x68] sm:$0xff]
      %v1602 = vld [vmem:[%s1587 + $0x70] sm:$0xff]
      %v1603 = vld [vmem:[%s1587 + $0x78] sm:$0xff]
      %v1604 = vld [vmem:[%s1587 + $0x80] sm:$0xff]
      %v1605 = vld [vmem:[%s1587 + $0x88] sm:$0xff]
      %v1606 = vld [vmem:[%s1587 + $0x90] sm:$0xff]
      %v1607 = vld [vmem:[%s1587 + $0x98] sm:$0xff]
      %v1608 = vld [vmem:[%s1587 + $0xa0] sm:$0xff]
      %v1609 = vld [vmem:[%s1587 + $0xa8] sm:$0xff]
      %v1610 = vld [vmem:[%s1587 + $0xb0] sm:$0xff]
      %v1611 = vld [vmem:[%s1587 + $0xb8] sm:$0xff]
      %v1612 = vld [vmem:[%s1587 + $0xc0] sm:$0xff]
      %v1613 = vld [vmem:[%s1587 + $0xc8] sm:$0xff]
      %v1614 = vld [vmem:[%s1587 + $0xd0] sm:$0xff]
      %v1615 = vld [vmem:[%s1587 + $0xd8] sm:$0xff]
      %v1616 = vld [vmem:[%s1587 + $0xe0] sm:$0xff]
      %v1617 = vld [vmem:[%s1587 + $0xe8] sm:$0xff]
      %v1618 = vld [vmem:[%s1587 + $0xf0] sm:$0xff]
      %v1619 = vld [vmem:[%s1587 + $0xf8] sm:$0xff]
      %v1620 = vld [vmem:[%s1587 + $0x100] sm:$0xff]
      %v1621 = vld [vmem:[%s1587 + $0x108] sm:$0xff]
      %v1622 = vld [vmem:[%s1587 + $0x110] sm:$0xff]
      %v1623 = vld [vmem:[%s1587 + $0x118] sm:$0xff]
      %v1624 = vld [vmem:[%s1587 + $0x120] sm:$0xff]
      %v1625 = vld [vmem:[%s1587 + $0x128] sm:$0xff]
      %v1626 = vld [vmem:[%s1587 + $0x130] sm:$0xff]
      %v1627 = vld [vmem:[%s1587 + $0x138] sm:$0xff]
      %v1628 = vld [vmem:[%s1587 + $0x140] sm:$0xff]
      %v1629 = vld [vmem:[%s1587 + $0x148] sm:$0xff]
      %v1630 = vld [vmem:[%s1587 + $0x150] sm:$0xff]
      %v1631 = vld [vmem:[%s1587 + $0x158] sm:$0xff]
      %v1632 = vld [vmem:[%s1587 + $0x160] sm:$0xff]
      %v1633 = vld [vmem:[%s1587 + $0x168] sm:$0xff]
      %v1634 = vld [vmem:[%s1587 + $0x170] sm:$0xff]
      %v1635 = vld [vmem:[%s1587 + $0x178] sm:$0xff]
      %1636 = vmatprep.subr.mxu0 0.0
      %1637 = vmatpush1.msra.mxu0 %v1588
      %1638 = vmatprep.subr.mxu0 0.0
      %1639 = vmatpush1.msra.mxu0 %v1589
      %1640 = vmatprep.subr.mxu0 0.0
      %1641 = vmatpush1.msra.mxu0 %v1590
      %1642 = vmatprep.subr.mxu0 0.0
      %1643 = vmatpush1.msra.mxu0 %v1591
      %1644 = vmatprep.subr.mxu0 0.0
      %1645 = vmatpush1.msra.mxu0 %v1592
      %1646 = vmatprep.subr.mxu0 0.0
      %1647 = vmatpush1.msra.mxu0 %v1593
      %1648 = vmatprep.subr.mxu0 0.0
      %1649 = vmatpush1.msra.mxu0 %v1594
      %1650 = vmatprep.subr.mxu0 0.0
      %1651 = vmatpush1.msra.mxu0 %v1595
      %1652 = vmatprep.subr.mxu0 0.0
      %1653 = vmatpush1.msra.mxu0 %v1596
      %1654 = vmatprep.subr.mxu0 0.0
      %1655 = vmatpush1.msra.mxu0 %v1597
      %1656 = vmatprep.subr.mxu0 0.0
      %1657 = vmatpush1.msra.mxu0 %v1598
      %1658 = vmatprep.subr.mxu0 0.0
      %1659 = vmatpush1.msra.mxu0 %v1599
      %1660 = vmatprep.subr.mxu0 0.0
      %1661 = vmatpush1.msra.mxu0 %v1600
      %1662 = vmatprep.subr.mxu0 0.0
      %1663 = vmatpush1.msra.mxu0 %v1601
      %1664 = vmatprep.subr.mxu0 0.0
      %1665 = vmatpush1.msra.mxu0 %v1602
      %1666 = vmatprep.subr.mxu0 0.0
      %1667 = vmatpush1.msra.mxu0 %v1603
      %1668 = vmatprep.subr.mxu0 0.0
      %1669 = vmatpush1.msra.mxu0 %v1604
      %1670 = vmatprep.subr.mxu0 0.0
      %1671 = vmatpush1.msra.mxu0 %v1605
      %1672 = vmatprep.subr.mxu0 0.0
      %1673 = vmatpush1.msra.mxu0 %v1606
      %1674 = vmatprep.subr.mxu0 0.0
      %1675 = vmatpush1.msra.mxu0 %v1607
      %1676 = vmatprep.subr.mxu0 0.0
      %1677 = vmatpush1.msra.mxu0 %v1608
      %1678 = vmatprep.subr.mxu0 0.0
      %1679 = vmatpush1.msra.mxu0 %v1609
      %1680 = vmatprep.subr.mxu0 0.0
      %1681 = vmatpush1.msra.mxu0 %v1610
      %1682 = vmatprep.subr.mxu0 0.0
      %1683 = vmatpush1.msra.mxu0 %v1611
      %1684 = vmatprep.subr.mxu0 0.0
      %1685 = vmatpush1.msra.mxu0 %v1612
      %1686 = vmatprep.subr.mxu0 0.0
      %1687 = vmatpush1.msra.mxu0 %v1613
      %1688 = vmatprep.subr.mxu0 0.0
      %1689 = vmatpush1.msra.mxu0 %v1614
      %1690 = vmatprep.subr.mxu0 0.0
      %1691 = vmatpush1.msra.mxu0 %v1615
      %1692 = vmatprep.subr.mxu0 0.0
      %1693 = vmatpush1.msra.mxu0 %v1616
      %1694 = vmatprep.subr.mxu0 0.0
      %1695 = vmatpush1.msra.mxu0 %v1617
      %1696 = vmatprep.subr.mxu0 0.0
      %1697 = vmatpush1.msra.mxu0 %v1618
      %1698 = vmatprep.subr.mxu0 0.0
      %1699 = vmatpush1.msra.mxu0 %v1619
      %1700 = vmatprep.mubr.f32.mxu0 %v1516
      %1701 = vmatmul.mubr.f32.gmra.mrb[0].mxu0 %v1515
      %v1702 = vpop.f32.mrb[0].mxu0
      %v1703 = vadd.f32 0.0, %v1702
      %v1704 = vpop.f32.mrb[0].mxu0
      %1705 = vmatprep.mubr.f32.mxu0 %v1519
      %1706 = vmatmul.mubr.f32.gmra.mrb[0].mxu0 %v1518
      %v1707 = vpop.f32.mrb[0].mxu0
      %v1708 = vadd.f32 0.0, %v1707
      %v1709 = vpop.f32.mrb[0].mxu0
      %1710 = vmatprep.mubr.f32.mxu0 %v1522
      %1711 = vmatmul.mubr.f32.gmra.mrb[0].mxu0 %v1521
      %v1712 = vpop.f32.mrb[0].mxu0
      %v1713 = vadd.f32 0.0, %v1712
      %v1714 = vpop.f32.mrb[0].mxu0
      %1715 = vmatprep.mubr.f32.mxu0 %v1525
      %1716 = vmatmul.mubr.f32.gmra.mrb[0].mxu0 %v1524
      %v1717 = vpop.f32.mrb[0].mxu0
      %v1718 = vadd.f32 0.0, %v1717
      %v1719 = vpop.f32.mrb[0].mxu0
      %1720 = vmatprep.mubr.f32.mxu0 %v1528
      %1721 = vmatmul.mubr.f32.gmra.mrb[0].mxu0 %v1527
      %v1722 = vpop.f32.mrb[0].mxu0
      %v1723 = vadd.f32 0.0, %v1722
      %v1724 = vpop.f32.mrb[0].mxu0
      %1725 = vmatprep.mubr.f32.mxu0 %v1531
      %1726 = vmatmul.mubr.f32.gmra.mrb[0].mxu0 %v1530
      %v1727 = vpop.f32.mrb[0].mxu0
      %v1728 = vadd.f32 0.0, %v1727
      %v1729 = vpop.f32.mrb[0].mxu0
      %1730 = vmatprep.mubr.f32.mxu0 %v1534
      %1731 = vmatmul.mubr.f32.gmra.mrb[0].mxu0 %v1533
      %v1732 = vpop.f32.mrb[0].mxu0
      %v1733 = vadd.f32 0.0, %v1732
      %v1734 = vpop.f32.mrb[0].mxu0
      %1735 = vmatprep.mubr.f32.mxu0 %v1537
      %1736 = vmatmul.mubr.f32.gmra.mrb[0].mxu0 %v1536
      %v1737 = vpop.f32.mrb[0].mxu0
      %v1738 = vadd.f32 0.0, %v1737
      %v1739 = vpop.f32.mrb[0].mxu0
      %1740 = vmatprep.mubr.f32.mxu0 %v1540
      %1741 = vmatmul.mubr.f32.gmra.mrb[0].mxu0 %v1539
      %v1742 = vpop.f32.mrb[0].mxu0
      %v1743 = vadd.f32 0.0, %v1742
      %v1744 = vpop.f32.mrb[0].mxu0
      %1745 = vmatprep.mubr.f32.mxu0 %v1543
      %1746 = vmatmul.mubr.f32.gmra.mrb[0].mxu0 %v1542
      %v1747 = vpop.f32.mrb[0].mxu0
      %v1748 = vadd.f32 0.0, %v1747
      %v1749 = vpop.f32.mrb[0].mxu0
      %1750 = vmatprep.mubr.f32.mxu0 %v1546
      %1751 = vmatmul.mubr.f32.gmra.mrb[0].mxu0 %v1545
      %v1752 = vpop.f32.mrb[0].mxu0
      %v1753 = vadd.f32 0.0, %v1752
      %v1754 = vpop.f32.mrb[0].mxu0
      %1755 = vmatprep.mubr.f32.mxu0 %v1549
      %1756 = vmatmul.mubr.f32.gmra.mrb[0].mxu0 %v1548
      %v1757 = vpop.f32.mrb[0].mxu0
      %v1758 = vadd.f32 0.0, %v1757
      %v1759 = vpop.f32.mrb[0].mxu0
      %1760 = vmatprep.mubr.f32.mxu0 %v1552
      %1761 = vmatmul.mubr.f32.gmra.mrb[0].mxu0 %v1551
      %v1762 = vpop.f32.mrb[0].mxu0
      %v1763 = vadd.f32 0.0, %v1762
      %v1764 = vpop.f32.mrb[0].mxu0
      %1765 = vmatprep.mubr.f32.mxu0 %v1555
      %1766 = vmatmul.mubr.f32.gmra.mrb[0].mxu0 %v1554
      %v1767 = vpop.f32.mrb[0].mxu0
      %v1768 = vadd.f32 0.0, %v1767
      %v1769 = vpop.f32.mrb[0].mxu0
      %1770 = vmatprep.mubr.f32.mxu0 %v1558
      %1771 = vmatmul.mubr.f32.gmra.mrb[0].mxu0 %v1557
      %v1772 = vpop.f32.mrb[0].mxu0
      %v1773 = vadd.f32 0.0, %v1772
      %v1774 = vpop.f32.mrb[0].mxu0
      %1775 = vmatprep.mubr.f32.mxu0 %v1561
      %1776 = vmatmul.mubr.f32.gmra.mrb[0].mxu0 %v1560
      %v1777 = vpop.f32.mrb[0].mxu0
      %v1778 = vadd.f32 0.0, %v1777
      %v1779 = vpop.f32.mrb[0].mxu0
      %1780 = vmatprep.mubr.f32.mxu0 %v1564
      %1781 = vmatmul.mubr.f32.gmra.mrb[0].mxu0 %v1563
      %v1782 = vpop.f32.mrb[0].mxu0
      %v1783 = vadd.f32 0.0, %v1782
      %v1784 = vpop.f32.mrb[0].mxu0
      %1785 = vmatprep.mubr.f32.mxu0 %v1567
      %1786 = vmatmul.mubr.f32.gmra.mrb[0].mxu0 %v1566
      %v1787 = vpop.f32.mrb[0].mxu0
      %v1788 = vadd.f32 0.0, %v1787
      %v1789 = vpop.f32.mrb[0].mxu0
      %1790 = vmatprep.mubr.f32.mxu0 %v1570
      %1791 = vmatmul.mubr.f32.gmra.mrb[0].mxu0 %v1569
      %v1792 = vpop.f32.mrb[0].mxu0
      %v1793 = vadd.f32 0.0, %v1792
      %v1794 = vpop.f32.mrb[0].mxu0
      %1795 = vmatprep.mubr.f32.mxu0 %v1573
      %1796 = vmatmul.mubr.f32.gmra.mrb[0].mxu0 %v1572
      %v1797 = vpop.f32.mrb[0].mxu0
      %v1798 = vadd.f32 0.0, %v1797
      %v1799 = vpop.f32.mrb[0].mxu0
      %1800 = vmatprep.mubr.f32.mxu0 %v1576
      %1801 = vmatmul.mubr.f32.gmra.mrb[0].mxu0 %v1575
      %v1802 = vpop.f32.mrb[0].mxu0
      %v1803 = vadd.f32 0.0, %v1802
      %v1804 = vpop.f32.mrb[0].mxu0
      %1805 = vmatprep.mubr.f32.mxu0 %v1579
      %1806 = vmatmul.mubr.f32.gmra.mrb[0].mxu0 %v1578
      %v1807 = vpop.f32.mrb[0].mxu0
      %v1808 = vadd.f32 0.0, %v1807
      %v1809 = vpop.f32.mrb[0].mxu0
      %1810 = vmatprep.mubr.f32.mxu0 %v1582
      %1811 = vmatmul.mubr.f32.gmra.mrb[0].mxu0 %v1581
      %v1812 = vpop.f32.mrb[0].mxu0
      %v1813 = vadd.f32 0.0, %v1812
      %v1814 = vpop.f32.mrb[0].mxu0
      %1815 = vmatprep.mubr.f32.mxu0 %v1585
      %1816 = vmatmul.mubr.f32.gmra.mrb[0].mxu0 %v1584
      %v1817 = vpop.f32.mrb[0].mxu0
      %v1818 = vadd.f32 0.0, %v1817
      %v1819 = vpop.f32.mrb[0].mxu0
      %1820 = vdwg.mxu0
      %1821 = vmatprep.subr.mxu0 0.0
      %1822 = vmatpush1.msra.mxu0 %v1620
      %1823 = vmatprep.subr.mxu0 0.0
      %1824 = vmatpush1.msra.mxu0 %v1621
      %1825 = vmatprep.subr.mxu0 0.0
      %1826 = vmatpush1.msra.mxu0 %v1622
      %1827 = vmatprep.subr.mxu0 0.0
      %1828 = vmatpush1.msra.mxu0 %v1623
      %1829 = vmatprep.subr.mxu0 0.0
      %1830 = vmatpush1.msra.mxu0 %v1624
      %1831 = vmatprep.subr.mxu0 0.0
      %1832 = vmatpush1.msra.mxu0 %v1625
      %1833 = vmatprep.subr.mxu0 0.0
      %1834 = vmatpush1.msra.mxu0 %v1626
      %1835 = vmatprep.subr.mxu0 0.0
      %1836 = vmatpush1.msra.mxu0 %v1627
      %1837 = vmatprep.subr.mxu0 0.0
      %1838 = vmatpush1.msra.mxu0 %v1628
      %1839 = vmatprep.subr.mxu0 0.0
      %1840 = vmatpush1.msra.mxu0 %v1629
      %1841 = vmatprep.subr.mxu0 0.0
      %1842 = vmatpush1.msra.mxu0 %v1630
      %1843 = vmatprep.subr.mxu0 0.0
      %1844 = vmatpush1.msra.mxu0 %v1631
      %1845 = vmatprep.subr.mxu0 0.0
      %1846 = vmatpush1.msra.mxu0 %v1632
      %1847 = vmatprep.subr.mxu0 0.0
      %1848 = vmatpush1.msra.mxu0 %v1633
      %1849 = vmatprep.subr.mxu0 0.0
      %1850 = vmatpush1.msra.mxu0 %v1634
      %1851 = vmatprep.subr.mxu0 0.0
      %1852 = vmatpush1.msra.mxu0 %v1635
      %1853 = vmatprep.subr.mxu0 0.0
      %1854 = vmatpush1.msra.mxu0 0.0
      %1855 = vmatprep.subr.mxu0 0.0
      %1856 = vmatpush1.msra.mxu0 0.0
      %1857 = vmatprep.subr.mxu0 0.0
      %1858 = vmatpush1.msra.mxu0 0.0
      %1859 = vmatprep.subr.mxu0 0.0
      %1860 = vmatpush1.msra.mxu0 0.0
      %1861 = vmatprep.subr.mxu0 0.0
      %1862 = vmatpush1.msra.mxu0 0.0
      %1863 = vmatprep.subr.mxu0 0.0
      %1864 = vmatpush1.msra.mxu0 0.0
      %1865 = vmatprep.subr.mxu0 0.0
      %1866 = vmatpush1.msra.mxu0 0.0
      %1867 = vmatprep.subr.mxu0 0.0
      %1868 = vmatpush1.msra.mxu0 0.0
      %1869 = vmatprep.subr.mxu0 0.0
      %1870 = vmatpush1.msra.mxu0 0.0
      %1871 = vmatprep.subr.mxu0 0.0
      %1872 = vmatpush1.msra.mxu0 0.0
      %1873 = vmatprep.subr.mxu0 0.0
      %1874 = vmatpush1.msra.mxu0 0.0
      %1875 = vmatprep.subr.mxu0 0.0
      %1876 = vmatpush1.msra.mxu0 0.0
      %1877 = vmatprep.subr.mxu0 0.0
      %1878 = vmatpush1.msra.mxu0 0.0
      %1879 = vmatprep.subr.mxu0 0.0
      %1880 = vmatpush1.msra.mxu0 0.0
      %1881 = vmatprep.subr.mxu0 0.0
      %1882 = vmatpush1.msra.mxu0 0.0
      %1883 = vmatprep.subr.mxu0 0.0
      %1884 = vmatpush1.msra.mxu0 0.0
      %1885 = vmatprep.mubr.f32.mxu0 0.0
      %1886 = vmatmul.mubr.f32.gmra.mrb[0].mxu0 %v1517
      %v1887 = vpop.f32.mrb[0].mxu0
      %v1888 = vadd.f32 %v1703, %v1887
      %v1889 = vpop.f32.mrb[0].mxu0
      %1890 = vmatprep.mubr.f32.mxu0 0.0
      %1891 = vmatmul.mubr.f32.gmra.mrb[0].mxu0 %v1520
      %v1892 = vpop.f32.mrb[0].mxu0
      %v1893 = vadd.f32 %v1708, %v1892
      %v1894 = vpop.f32.mrb[0].mxu0
      %1895 = vmatprep.mubr.f32.mxu0 0.0
      %1896 = vmatmul.mubr.f32.gmra.mrb[0].mxu0 %v1523
      %v1897 = vpop.f32.mrb[0].mxu0
      %v1898 = vadd.f32 %v1713, %v1897
      %v1899 = vpop.f32.mrb[0].mxu0
      %1900 = vmatprep.mubr.f32.mxu0 0.0
      %1901 = vmatmul.mubr.f32.gmra.mrb[0].mxu0 %v1526
      %v1902 = vpop.f32.mrb[0].mxu0
      %v1903 = vadd.f32 %v1718, %v1902
      %v1904 = vpop.f32.mrb[0].mxu0
      %1905 = vmatprep.mubr.f32.mxu0 0.0
      %1906 = vmatmul.mubr.f32.gmra.mrb[0].mxu0 %v1529
      %v1907 = vpop.f32.mrb[0].mxu0
      %v1908 = vadd.f32 %v1723, %v1907
      %v1909 = vpop.f32.mrb[0].mxu0
      %1910 = vmatprep.mubr.f32.mxu0 0.0
      %1911 = vmatmul.mubr.f32.gmra.mrb[0].mxu0 %v1532
      %v1912 = vpop.f32.mrb[0].mxu0
      %v1913 = vadd.f32 %v1728, %v1912
      %v1914 = vpop.f32.mrb[0].mxu0
      %1915 = vmatprep.mubr.f32.mxu0 0.0
      %1916 = vmatmul.mubr.f32.gmra.mrb[0].mxu0 %v1535
      %v1917 = vpop.f32.mrb[0].mxu0
      %v1918 = vadd.f32 %v1733, %v1917
      %v1919 = vpop.f32.mrb[0].mxu0
      %1920 = vmatprep.mubr.f32.mxu0 0.0
      %1921 = vmatmul.mubr.f32.gmra.mrb[0].mxu0 %v1538
      %v1922 = vpop.f32.mrb[0].mxu0
      %v1923 = vadd.f32 %v1738, %v1922
      %v1924 = vpop.f32.mrb[0].mxu0
      %1925 = vmatprep.mubr.f32.mxu0 0.0
      %1926 = vmatmul.mubr.f32.gmra.mrb[0].mxu0 %v1541
      %v1927 = vpop.f32.mrb[0].mxu0
      %v1928 = vadd.f32 %v1743, %v1927
      %v1929 = vpop.f32.mrb[0].mxu0
      %1930 = vmatprep.mubr.f32.mxu0 0.0
      %1931 = vmatmul.mubr.f32.gmra.mrb[0].mxu0 %v1544
      %v1932 = vpop.f32.mrb[0].mxu0
      %v1933 = vadd.f32 %v1748, %v1932
      %v1934 = vpop.f32.mrb[0].mxu0
      %1935 = vmatprep.mubr.f32.mxu0 0.0
      %1936 = vmatmul.mubr.f32.gmra.mrb[0].mxu0 %v1547
      %v1937 = vpop.f32.mrb[0].mxu0
      %v1938 = vadd.f32 %v1753, %v1937
      %v1939 = vpop.f32.mrb[0].mxu0
      %1940 = vmatprep.mubr.f32.mxu0 0.0
      %1941 = vmatmul.mubr.f32.gmra.mrb[0].mxu0 %v1550
      %v1942 = vpop.f32.mrb[0].mxu0
      %v1943 = vadd.f32 %v1758, %v1942
      %v1944 = vpop.f32.mrb[0].mxu0
      %1945 = vmatprep.mubr.f32.mxu0 0.0
      %1946 = vmatmul.mubr.f32.gmra.mrb[0].mxu0 %v1553
      %v1947 = vpop.f32.mrb[0].mxu0
      %v1948 = vadd.f32 %v1763, %v1947
      %v1949 = vpop.f32.mrb[0].mxu0
      %1950 = vmatprep.mubr.f32.mxu0 0.0
      %1951 = vmatmul.mubr.f32.gmra.mrb[0].mxu0 %v1556
      %v1952 = vpop.f32.mrb[0].mxu0
      %v1953 = vadd.f32 %v1768, %v1952
      %v1954 = vpop.f32.mrb[0].mxu0
      %1955 = vmatprep.mubr.f32.mxu0 0.0
      %1956 = vmatmul.mubr.f32.gmra.mrb[0].mxu0 %v1559
      %v1957 = vpop.f32.mrb[0].mxu0
      %v1958 = vadd.f32 %v1773, %v1957
      %v1959 = vpop.f32.mrb[0].mxu0
      %1960 = vmatprep.mubr.f32.mxu0 0.0
      %1961 = vmatmul.mubr.f32.gmra.mrb[0].mxu0 %v1562
      %v1962 = vpop.f32.mrb[0].mxu0
      %v1963 = vadd.f32 %v1778, %v1962
      %v1964 = vpop.f32.mrb[0].mxu0
      %1965 = vmatprep.mubr.f32.mxu0 0.0
      %1966 = vmatmul.mubr.f32.gmra.mrb[0].mxu0 %v1565
      %v1967 = vpop.f32.mrb[0].mxu0
      %v1968 = vadd.f32 %v1783, %v1967
      %v1969 = vpop.f32.mrb[0].mxu0
      %1970 = vmatprep.mubr.f32.mxu0 0.0
      %1971 = vmatmul.mubr.f32.gmra.mrb[0].mxu0 %v1568
      %v1972 = vpop.f32.mrb[0].mxu0
      %v1973 = vadd.f32 %v1788, %v1972
      %v1974 = vpop.f32.mrb[0].mxu0
      %1975 = vmatprep.mubr.f32.mxu0 0.0
      %1976 = vmatmul.mubr.f32.gmra.mrb[0].mxu0 %v1571
      %v1977 = vpop.f32.mrb[0].mxu0
      %v1978 = vadd.f32 %v1793, %v1977
      %v1979 = vpop.f32.mrb[0].mxu0
      %1980 = vmatprep.mubr.f32.mxu0 0.0
      %1981 = vmatmul.mubr.f32.gmra.mrb[0].mxu0 %v1574
      %v1982 = vpop.f32.mrb[0].mxu0
      %v1983 = vadd.f32 %v1798, %v1982
      %v1984 = vpop.f32.mrb[0].mxu0
      %1985 = vmatprep.mubr.f32.mxu0 0.0
      %1986 = vmatmul.mubr.f32.gmra.mrb[0].mxu0 %v1577
      %v1987 = vpop.f32.mrb[0].mxu0
      %v1988 = vadd.f32 %v1803, %v1987
      %v1989 = vpop.f32.mrb[0].mxu0
      %1990 = vmatprep.mubr.f32.mxu0 0.0
      %1991 = vmatmul.mubr.f32.gmra.mrb[0].mxu0 %v1580
      %v1992 = vpop.f32.mrb[0].mxu0
      %v1993 = vadd.f32 %v1808, %v1992
      %v1994 = vpop.f32.mrb[0].mxu0
      %1995 = vmatprep.mubr.f32.mxu0 0.0
      %1996 = vmatmul.mubr.f32.gmra.mrb[0].mxu0 %v1583
      %v1997 = vpop.f32.mrb[0].mxu0
      %v1998 = vadd.f32 %v1813, %v1997
      %v1999 = vpop.f32.mrb[0].mxu0
      %2000 = vmatprep.mubr.f32.mxu0 0.0
      %2001 = vmatmul.mubr.f32.gmra.mrb[0].mxu0 %v1586
      %v2002 = vpop.f32.mrb[0].mxu0
      %v2003 = vadd.f32 %v1818, %v2002
      %v2004 = vpop.f32.mrb[0].mxu0
      %2005 = vdwg.mxu0
      %v2006 = vadd.f32 %v1491, %v1888
      %v2007 = vadd.f32 %v1492, %v1893
      %v2008 = vadd.f32 %v1493, %v1898
      %v2009 = vadd.f32 %v1494, %v1903
      %v2010 = vadd.f32 %v1495, %v1908
      %v2011 = vadd.f32 %v1496, %v1913
      %v2012 = vadd.f32 %v1497, %v1918
      %v2013 = vadd.f32 %v1498, %v1923
      %v2014 = vadd.f32 %v1499, %v1928
      %v2015 = vadd.f32 %v1500, %v1933
      %v2016 = vadd.f32 %v1501, %v1938
      %v2017 = vadd.f32 %v1502, %v1943
      %v2018 = vadd.f32 %v1503, %v1948
      %v2019 = vadd.f32 %v1504, %v1953
      %v2020 = vadd.f32 %v1505, %v1958
      %v2021 = vadd.f32 %v1506, %v1963
      %v2022 = vadd.f32 %v1507, %v1968
      %v2023 = vadd.f32 %v1508, %v1973
      %v2024 = vadd.f32 %v1509, %v1978
      %v2025 = vadd.f32 %v1510, %v1983
      %v2026 = vadd.f32 %v1511, %v1988
      %v2027 = vadd.f32 %v1512, %v1993
      %v2028 = vadd.f32 %v1513, %v1998
      %v2029 = vadd.f32 %v1514, %v2003
      %2030 = vst [vmem:[#allocation3] sm:$0xff] %v2006
      %2031 = vst [vmem:[#allocation3 + $0x8] sm:$0xff] %v2007
      %2032 = vst [vmem:[#allocation3 + $0x10] sm:$0xff] %v2008
      %2033 = vst [vmem:[#allocation3 + $0x18] sm:$0xff] %v2009
      %2034 = vst [vmem:[#allocation3 + $0x20] sm:$0xff] %v2010
      %2035 = vst [vmem:[#allocation3 + $0x28] sm:$0xff] %v2011
      %2036 = vst [vmem:[#allocation3 + $0x30] sm:$0xff] %v2012
      %2037 = vst [vmem:[#allocation3 + $0x38] sm:$0xff] %v2013
      %2038 = vst [vmem:[#allocation3 + $0x40] sm:$0xff] %v2014
      %2039 = vst [vmem:[#allocation3 + $0x48] sm:$0xff] %v2015
      %2040 = vst [vmem:[#allocation3 + $0x50] sm:$0xff] %v2016
      %2041 = vst [vmem:[#allocation3 + $0x58] sm:$0xff] %v2017
      %2042 = vst [vmem:[#allocation3 + $0x60] sm:$0xff] %v2018
      %2043 = vst [vmem:[#allocation3 + $0x68] sm:$0xff] %v2019
      %2044 = vst [vmem:[#allocation3 + $0x70] sm:$0xff] %v2020
      %2045 = vst [vmem:[#allocation3 + $0x78] sm:$0xff] %v2021
      %2046 = vst [vmem:[#allocation3 + $0x80] sm:$0xff] %v2022
      %2047 = vst [vmem:[#allocation3 + $0x88] sm:$0xff] %v2023
      %2048 = vst [vmem:[#allocation3 + $0x90] sm:$0xff] %v2024
      %2049 = vst [vmem:[#allocation3 + $0x98] sm:$0xff] %v2025
      %2050 = vst [vmem:[#allocation3 + $0xa0] sm:$0xff] %v2026
      %2051 = vst [vmem:[#allocation3 + $0xa8] sm:$0xff] %v2027
      %2052 = vst [vmem:[#allocation3 + $0xb0] sm:$0xff] %v2028
      %2053 = vst [vmem:[#allocation3 + $0xb8] sm:$0xff] %v2029
      %v2054 = vld [vmem:[#allocation3] sm:$0xff]
      %v2055 = vld [vmem:[#allocation3 + $0x8] sm:$0xff]
      %v2056 = vld [vmem:[#allocation3 + $0x10] sm:$0xff]
      %v2057 = vld [vmem:[#allocation3 + $0x18] sm:$0xff]
      %v2058 = vld [vmem:[#allocation3 + $0x20] sm:$0xff]
      %v2059 = vld [vmem:[#allocation3 + $0x28] sm:$0xff]
      %v2060 = vld [vmem:[#allocation3 + $0x30] sm:$0xff]
      %v2061 = vld [vmem:[#allocation3 + $0x38] sm:$0xff]
      %v2062 = vld [vmem:[#allocation3 + $0x40] sm:$0xff]
      %v2063 = vld [vmem:[#allocation3 + $0x48] sm:$0xff]
      %v2064 = vld [vmem:[#allocation3 + $0x50] sm:$0xff]
      %v2065 = vld [vmem:[#allocation3 + $0x58] sm:$0xff]
      %v2066 = vld [vmem:[#allocation3 + $0x60] sm:$0xff]
      %v2067 = vld [vmem:[#allocation3 + $0x68] sm:$0xff]
      %v2068 = vld [vmem:[#allocation3 + $0x70] sm:$0xff]
      %v2069 = vld [vmem:[#allocation3 + $0x78] sm:$0xff]
      %v2070 = vld [vmem:[#allocation3 + $0x80] sm:$0xff]
      %v2071 = vld [vmem:[#allocation3 + $0x88] sm:$0xff]
      %v2072 = vld [vmem:[#allocation3 + $0x90] sm:$0xff]
      %v2073 = vld [vmem:[#allocation3 + $0x98] sm:$0xff]
      %v2074 = vld [vmem:[#allocation3 + $0xa0] sm:$0xff]
      %v2075 = vld [vmem:[#allocation3 + $0xa8] sm:$0xff]
      %v2076 = vld [vmem:[#allocation3 + $0xb0] sm:$0xff]
      %v2077 = vld [vmem:[#allocation3 + $0xb8] sm:$0xff]
      %v2078 = vld [vmem:[%s2] sm:$0x1]
      %v2080 = vlaneseq
      %v2081 = vshrl.u32 %v2080, 7
      %v2082 = vsub.s32 0, %v2081
      %v2083 = vrot.slane %v2078, %v2082
      %v2085 = vmul.f32 %v2054, %v2083
      %v2086 = vmul.f32 %v2055, %v2083
      %v2087 = vmul.f32 %v2056, %v2083
      %v2088 = vmul.f32 %v2057, %v2083
      %v2089 = vmul.f32 %v2058, %v2083
      %v2090 = vmul.f32 %v2059, %v2083
      %v2091 = vmul.f32 %v2060, %v2083
      %v2092 = vmul.f32 %v2061, %v2083
      %v2093 = vmul.f32 %v2062, %v2083
      %v2094 = vmul.f32 %v2063, %v2083
      %v2095 = vmul.f32 %v2064, %v2083
      %v2096 = vmul.f32 %v2065, %v2083
      %v2097 = vmul.f32 %v2066, %v2083
      %v2098 = vmul.f32 %v2067, %v2083
      %v2099 = vmul.f32 %v2068, %v2083
      %v2100 = vmul.f32 %v2069, %v2083
      %v2101 = vmul.f32 %v2070, %v2083
      %v2102 = vmul.f32 %v2071, %v2083
      %v2103 = vmul.f32 %v2072, %v2083
      %v2104 = vmul.f32 %v2073, %v2083
      %v2105 = vmul.f32 %v2074, %v2083
      %v2106 = vmul.f32 %v2075, %v2083
      %v2107 = vmul.f32 %v2076, %v2083
      %v2108 = vmul.f32 %v2077, %v2083
      %v2109 = vld [vmem:[%s3] sm:$0x1]
      %v2111 = vlaneseq
      %v2112 = vshrl.u32 %v2111, 7
      %v2113 = vsub.s32 0, %v2112
      %v2114 = vrot.slane %v2109, %v2113
      %v2116 = vadd.f32 %v2085, %v2114
      %v2117 = vadd.f32 %v2086, %v2114
      %v2118 = vadd.f32 %v2087, %v2114
      %v2119 = vadd.f32 %v2088, %v2114
      %v2120 = vadd.f32 %v2089, %v2114
      %v2121 = vadd.f32 %v2090, %v2114
      %v2122 = vadd.f32 %v2091, %v2114
      %v2123 = vadd.f32 %v2092, %v2114
      %v2124 = vadd.f32 %v2093, %v2114
      %v2125 = vadd.f32 %v2094, %v2114
      %v2126 = vadd.f32 %v2095, %v2114
      %v2127 = vadd.f32 %v2096, %v2114
      %v2128 = vadd.f32 %v2097, %v2114
      %v2129 = vadd.f32 %v2098, %v2114
      %v2130 = vadd.f32 %v2099, %v2114
      %v2131 = vadd.f32 %v2100, %v2114
      %v2132 = vadd.f32 %v2101, %v2114
      %v2133 = vadd.f32 %v2102, %v2114
      %v2134 = vadd.f32 %v2103, %v2114
      %v2135 = vadd.f32 %v2104, %v2114
      %v2136 = vadd.f32 %v2105, %v2114
      %v2137 = vadd.f32 %v2106, %v2114
      %v2138 = vadd.f32 %v2107, %v2114
      %v2139 = vadd.f32 %v2108, %v2114
      %v2140 = vmax.f32 %v2116, 0.0
      %v2141 = vmax.f32 %v2117, 0.0
      %v2142 = vmax.f32 %v2118, 0.0
      %v2143 = vmax.f32 %v2119, 0.0
      %v2144 = vmax.f32 %v2120, 0.0
      %v2145 = vmax.f32 %v2121, 0.0
      %v2146 = vmax.f32 %v2122, 0.0
      %v2147 = vmax.f32 %v2123, 0.0
      %v2148 = vmax.f32 %v2124, 0.0
      %v2149 = vmax.f32 %v2125, 0.0
      %v2150 = vmax.f32 %v2126, 0.0
      %v2151 = vmax.f32 %v2127, 0.0
      %v2152 = vmax.f32 %v2128, 0.0
      %v2153 = vmax.f32 %v2129, 0.0
      %v2154 = vmax.f32 %v2130, 0.0
      %v2155 = vmax.f32 %v2131, 0.0
      %v2156 = vmax.f32 %v2132, 0.0
      %v2157 = vmax.f32 %v2133, 0.0
      %v2158 = vmax.f32 %v2134, 0.0
      %v2159 = vmax.f32 %v2135, 0.0
      %v2160 = vmax.f32 %v2136, 0.0
      %v2161 = vmax.f32 %v2137, 0.0
      %v2162 = vmax.f32 %v2138, 0.0
      %v2163 = vmax.f32 %v2139, 0.0
      %2164 = vst [vmem:[%s233] sm:$0xff] %v2140
      %2165 = vst [vmem:[%s233 + $0x8] sm:$0xff] %v2141
      %2166 = vst [vmem:[%s233 + $0x10] sm:$0xff] %v2142
      %2167 = vst [vmem:[%s233 + $0x18] sm:$0xff] %v2143
      %2168 = vst [vmem:[%s233 + $0x20] sm:$0xff] %v2144
      %2169 = vst [vmem:[%s233 + $0x28] sm:$0xff] %v2145
      %2170 = vst [vmem:[%s233 + $0x30] sm:$0xff] %v2146
      %2171 = vst [vmem:[%s233 + $0x38] sm:$0xff] %v2147
      %2172 = vst [vmem:[%s233 + $0x40] sm:$0xff] %v2148
      %2173 = vst [vmem:[%s233 + $0x48] sm:$0xff] %v2149
      %2174 = vst [vmem:[%s233 + $0x50] sm:$0xff] %v2150
      %2175 = vst [vmem:[%s233 + $0x58] sm:$0xff] %v2151
      %2176 = vst [vmem:[%s233 + $0x60] sm:$0xff] %v2152
      %2177 = vst [vmem:[%s233 + $0x68] sm:$0xff] %v2153
      %2178 = vst [vmem:[%s233 + $0x70] sm:$0xff] %v2154
      %2179 = vst [vmem:[%s233 + $0x78] sm:$0xff] %v2155
      %2180 = vst [vmem:[%s233 + $0x80] sm:$0xff] %v2156
      %2181 = vst [vmem:[%s233 + $0x88] sm:$0xff] %v2157
      %2182 = vst [vmem:[%s233 + $0x90] sm:$0xff] %v2158
      %2183 = vst [vmem:[%s233 + $0x98] sm:$0xff] %v2159
      %2184 = vst [vmem:[%s233 + $0xa0] sm:$0xff] %v2160
      %2185 = vst [vmem:[%s233 + $0xa8] sm:$0xff] %v2161
      %2186 = vst [vmem:[%s233 + $0xb0] sm:$0xff] %v2162
      %2187 = vst [vmem:[%s233 + $0xb8] sm:$0xff] %v2163
      %p2188 = scmp.lt.s32.totalorder %s19, 1
      %s2189 = scalar_select %p2188, %s19, 1
      %p2190 = scmp.lt.s32.totalorder %s20, 1
      %s2191 = scalar_select %p2190, %s20, 1
      %s2192 = smul.addr %s2191, 24
      %s2193 = smul.addr %s2189, 48
      %s2194 = sadd.s32 %s2192, %s2193
      %s2195 = smul.addr %s2194, 8
      %s2196 = scalar_lea.vmem %s4, %s2195
      // Predicated region
      $region37: #{unet_module_forward.2} parent=35 // pred_check
        %p2197 = pneg %p138
      $region38: #{unet_module_forward.2} parent=35 // pred_check_branch
        %2199 = sbr.rel (%p2197) target = $region40
      $region39: #{unet_module_forward.2} parent=35 // pred_region
        _
      $region40: #{unet_module_forward.2} parent=35 // pred_fallthru
        _
    $region36: #{unet_module_forward.2} parent=5 // pred_fallthru
      _
    %p2200 = scmp.le.s32.totalorder 2, %s10
    // Predicated region
    $region41: #{unet_module_forward.2} parent=5 // pred_check
      %p2201 = pneg %p2200
    $region42: #{unet_module_forward.2} parent=5 // pred_check_branch
      %2203 = sbr.rel (%p2201) target = $region44
    $region43: #{unet_module_forward.2} parent=5 // pred_region
      %s2204 = ssub.s32 %s10, 2
      // Predicated region
      $region45: #{unet_module_forward.2} parent=43 // pred_check
        %p2205 = pneg %p144
      $region46: #{unet_module_forward.2} parent=43 // pred_check_branch
        %2207 = sbr.rel (%p2205) target = $region48
      $region47: #{unet_module_forward.2} parent=43 // pred_region
        %p2208 = scmp.lt.s32.totalorder %s21, 1
        %s2209 = scalar_select %p2208, %s21, 1
        %p2210 = scmp.lt.s32.totalorder %s22, 1
        %s2211 = scalar_select %p2210, %s22, 1
        %s2212 = smul.addr %s2211, 24
        %s2213 = smul.addr %s2209, 48
        %s2214 = sadd.s32 %s2212, %s2213
        %s2215 = smul.addr %s2214, 8
        %s2216 = scalar_lea.vmem %s4, %s2215
      $region48: #{unet_module_forward.2} parent=43 // pred_fallthru
        _
    $region44: #{unet_module_forward.2} parent=5 // pred_fallthru
      _
  $region6: #{unet_module_forward.2} parent=0 // loop_footer
    %s14 = sadd.s32 1, %s10
  $region7: #{unet_module_forward.2} parent=0 // loop_footer_branch
    %9 = sbr.rel target = $region3
  $region8: #{unet_module_forward.2} parent=0 // loop_exit
    _

</llo_original>
